<compile_context>
chip_gen: v7x
topology: tpu7x:2x2x1
jax: 0.10.0
libtpu: 0.0.40
codegen_flags: <defaults>
</compile_context>

<pallas_src>
import functools

import jax
import jax.numpy as jnp
from jax import lax
from jax.experimental import pallas as pl
from jax.experimental.pallas import tpu as pltpu


def _round_up(x, m):
    return ((x + m - 1) // m) * m


def _sigmoid(x):
    # sigmoid(x) == 0.5 * tanh(0.5 * x) + 0.5 : one EUP push (tanh) instead of
    # exp + reciprocal (two EUP pushes). VPU mul/add are in non-saturated slots.
    return 0.5 * jnp.tanh(0.5 * x) + 0.5


def lstm_fc_kernel(x_ref, w_ih_ref, w_hh_ref, b_ref, w_fc_ref, b_fc_ref,
                   out_ref, gx_sc, h_sc, c_sc, *, tc, hp, seq_len, mask_tail):
    """Grid = (batch_blocks ["parallel"], time_chunks ["arbitrary"]).

    x_ref:     (Tc, Bb, D)    time-chunk of inputs for this batch block
    weights:   whole (padded) arrays resident in VMEM (no per-step re-DMA)
    out_ref:   (Bb, Op)       written once, on the last time chunk
    gx_sc:     (Tc, Bb, 4Hp)  precomputed input-gate pre-activations
    h_sc/c_sc: (Bb, Hp)       recurrent state carried across time chunks
    """
    ti = pl.program_id(1)

    # State carry relies on the time axis being the innermost grid axis
    # ("arbitrary", sequential) and scratch being per-core under the
    # 'parallel' batch axis. Re-initialized at ti == 0 for every batch block.
    @pl.when(ti == 0)
    def _():
        h_sc[...] = jnp.zeros_like(h_sc)
        c_sc[...] = jnp.zeros_like(c_sc)

    # ---- Hoisted input projection for the whole chunk: one tall MXU matmul.
    tcs, bb, d = x_ref.shape
    x_flat = x_ref[...].reshape(tcs * bb, d).astype(w_ih_ref.dtype)
    gx = jnp.dot(x_flat, w_ih_ref[...], preferred_element_type=jnp.float32)
    gx = gx + b_ref[...]                      # bias added once per chunk
    gx_sc[...] = gx.reshape(tcs, bb, 4 * hp)

    # ---- Sequential recurrence over the chunk: only h @ W_hh per step.
    # W_hh is loop-invariant across the (partially unrolled) steps, letting
    # Mosaic keep the RHS latched in the MXU weight registers.
    # TODO(synk): explicit pltpu.matmul_push_rhs/matmul_acc_lhs weight-stationary
    # driving (and per-128-lane gate column tiling for Hp >= 512) skipped for
    # lowering robustness.
    def step(t, carry):
        h, c = carry
        gates = gx_sc[t] + jnp.dot(h.astype(w_hh_ref.dtype), w_hh_ref[...],
                                   preferred_element_type=jnp.float32)
        # PyTorch gate order i, f, g, o; each slice is a whole 128-lane block.
        # Gate math kept f32 for v5e (no bf16 VPU/EUP); bf16 gates are a v6e/v7x
        # only micro-opt.
        i = _sigmoid(gates[:, 0 * hp:1 * hp])
        f = _sigmoid(gates[:, 1 * hp:2 * hp])
        g = jnp.tanh(gates[:, 2 * hp:3 * hp])
        o = _sigmoid(gates[:, 3 * hp:4 * hp])
        c_new = f * c + i * g
        h_new = o * jnp.tanh(c_new)
        if mask_tail:
            # Padded tail timesteps (global index >= seq_len) leave state as-is.
            valid = (ti * tc + t) < seq_len
            c_new = jnp.where(valid, c_new, c)
            h_new = jnp.where(valid, h_new, h)
        return (h_new, c_new)

    h, c = lax.fori_loop(0, tc, step, (h_sc[...], c_sc[...]),
                         unroll=min(tc, 8))
    h_sc[...] = h
    c_sc[...] = c

    # ---- Fused FC on the final hidden state (lane-dense padded output).
    @pl.when(ti == pl.num_programs(1) - 1)
    def _():
        out_ref[...] = (
            jnp.dot(h.astype(w_fc_ref.dtype), w_fc_ref[...],
                    preferred_element_type=jnp.float32)
            + b_fc_ref[...]
        ).astype(out_ref.dtype)


def lstm_model_forward(x, params, *, max_time_chunk=64,
                       vmem_budget_bytes=48 << 20):
    """x: (B, T, D) batch-first float32. Returns (B, output_dim) float32."""
    B, T, D = x.shape
    H = params["w_hh"].shape[0]
    O = params["w_fc"].shape[1]
    w_bytes = jnp.dtype(params["w_ih"].dtype).itemsize

    LANE, SUB = 128, 8
    Hp = _round_up(H, LANE)          # per-gate padding -> whole-vreg gate slices
    Op = _round_up(O, LANE)          # lane-dense output store

    # ---- Batch block: as big as the batch allows (M rows of the recurrence
    # matmul), while keeping >= 2 blocks on the 'parallel' axis when possible
    # so both v7x TensorCores get work.
    Bp8 = _round_up(B, SUB)
    if Bp8 >= 2 * SUB:
        Bb = min(128, _round_up(Bp8 // 2, SUB))
    else:
        Bb = Bp8
    Bp = _round_up(B, Bb)
    nb = Bp // Bb

    # ---- Time chunk: amortize per-grid-step overhead and make the hoisted
    # projection tall; shrink Tc until the VMEM budget (v7x-safe default) fits.
    def vmem_needed(tc):
        resident = (D * 4 * Hp + Hp * 4 * Hp + 4 * Hp + Hp * Op + Op) * w_bytes
        scratch = (tc * Bb * 4 * Hp + 2 * Bb * Hp) * 4          # gx + h + c (f32)
        io = 2 * tc * Bb * D * 4 + 2 * Bb * Op * 4              # dbl-buffered x/out
        return resident + scratch + io

    Tc = max(1, min(T, max_time_chunk))
    while Tc > 1 and vmem_needed(Tc) > vmem_budget_bytes:
        Tc = max(1, Tc // 2)
    Tp = _round_up(T, Tc)            # pad T; padded tail is masked in-kernel
    nt = Tp // Tc
    mask_tail = (Tp != T)

    # Explicit scoped-VMEM limit: above the v5e 16 MiB default when needed,
    # tight enough to be honest about the footprint on v7x's 64 MiB.
    vmem_limit = int(min(max(vmem_needed(Tc) * 5 // 4 + (1 << 20), 16 << 20),
                         127 << 20))

    # ---- Pad parameters gate-block-wise (exact: padded units stay zero).
    w_ih = jnp.pad(params["w_ih"].reshape(D, 4, H),
                   ((0, 0), (0, 0), (0, Hp - H))).reshape(D, 4 * Hp)
    w_hh = jnp.pad(params["w_hh"].reshape(H, 4, H),
                   ((0, Hp - H), (0, 0), (0, Hp - H))).reshape(Hp, 4 * Hp)
    b = jnp.pad(params["b"].reshape(1, 4, H),
                ((0, 0), (0, 0), (0, Hp - H))).reshape(1, 4 * Hp)
    w_fc = jnp.pad(params["w_fc"], ((0, Hp - H), (0, Op - O)))
    b_fc = jnp.pad(params["b_fc"], ((0, 0), (0, Op - O)))

    # Time-major input; batch padded to Bb rows, time padded to Tp (masked).
    x_tm = jnp.pad(jnp.transpose(x, (1, 0, 2)),
                   ((0, Tp - T), (0, Bp - B), (0, 0)))

    kernel = functools.partial(lstm_fc_kernel, tc=Tc, hp=Hp, seq_len=T,
                               mask_tail=mask_tail)
    const_spec = pl.BlockSpec(memory_space=pltpu.MemorySpace.VMEM)  # resident

    out = pl.pallas_call(
        kernel,
        out_shape=jax.ShapeDtypeStruct((Bp, Op), jnp.float32),
        grid_spec=pltpu.PrefetchScalarGridSpec(
            num_scalar_prefetch=0,
            grid=(nb, nt),
            in_specs=[
                pl.BlockSpec((Tc, Bb, D), lambda bi, ti: (ti, bi, 0)),  # x chunk
                const_spec,   # W_ih^T  (D,  4Hp)
                const_spec,   # W_hh^T  (Hp, 4Hp)
                const_spec,   # b_ih+b_hh (1, 4Hp)
                const_spec,   # W_fc^T  (Hp, Op)
                const_spec,   # b_fc    (1, Op)
            ],
            out_specs=pl.BlockSpec((Bb, Op), lambda bi, ti: (bi, 0)),
            scratch_shapes=[
                pltpu.VMEM((Tc, Bb, 4 * Hp), jnp.float32),  # chunk gate pre-acts
                pltpu.VMEM((Bb, Hp), jnp.float32),          # h state
                pltpu.VMEM((Bb, Hp), jnp.float32),          # c state
            ],
        ),
        compiler_params=pltpu.CompilerParams(
            dimension_semantics=("parallel", "arbitrary"),  # batch ∥, time seq
            vmem_limit_bytes=vmem_limit),
    )(x_tm, w_ih, w_hh, b, w_fc, b_fc)

    return out[:B, :O]


def make_params(key, input_dim, hidden_dim, output_dim, dtype=jnp.float32):
    """Deterministic init matching PyTorch shapes (weights stored transposed).
    For large H on v7x (64 MiB VMEM), pass dtype=jnp.bfloat16 — the kernel
    keeps f32 accumulation and f32 gate math (activations are cast to bf16
    for the dots, so loosen tolerance vs an f32 reference accordingly)."""
    k = jax.random.split(key, 6)
    s = 1.0 / jnp.sqrt(jnp.float32(hidden_dim))
    return dict(
        # PyTorch weight_ih_l0 is (4H, D): store transposed -> (D, 4H)
        w_ih=jax.random.uniform(k[0], (input_dim, 4 * hidden_dim), jnp.float32, -s, s).astype(dtype),
        # PyTorch weight_hh_l0 is (4H, H): store transposed -> (H, 4H)
        w_hh=jax.random.uniform(k[1], (hidden_dim, 4 * hidden_dim), jnp.float32, -s, s).astype(dtype),
        # b = bias_ih_l0 + bias_hh_l0, kept 2D for lane layout
        b=(jax.random.uniform(k[2], (1, 4 * hidden_dim), jnp.float32, -s, s)
           + jax.random.uniform(k[3], (1, 4 * hidden_dim), jnp.float32, -s, s)).astype(dtype),
        # fc.weight is (O, H): store transposed -> (H, O)
        w_fc=jax.random.uniform(k[4], (hidden_dim, output_dim), jnp.float32, -s, s).astype(dtype),
        b_fc=jax.random.uniform(k[5], (1, output_dim), jnp.float32, -s, s).astype(dtype),
    )


def reference_forward(x, params, hidden_dim):
    """Pure-JAX reference of the same forward pass (sanity check)."""
    B = x.shape[0]
    H = hidden_dim
    w_ih = params["w_ih"].astype(jnp.float32)
    w_hh = params["w_hh"].astype(jnp.float32)
    bias = params["b"].astype(jnp.float32)
    w_fc = params["w_fc"].astype(jnp.float32)
    b_fc = params["b_fc"].astype(jnp.float32)

    def step(carry, x_t):
        h, c = carry
        gates = x_t @ w_ih + h @ w_hh + bias
        i = jax.nn.sigmoid(gates[:, :H])
        f = jax.nn.sigmoid(gates[:, H:2 * H])
        g = jnp.tanh(gates[:, 2 * H:3 * H])
        o = jax.nn.sigmoid(gates[:, 3 * H:])
        c = f * c + i * g
        h = o * jnp.tanh(c)
        return (h, c), None

    init = (jnp.zeros((B, H), jnp.float32), jnp.zeros((B, H), jnp.float32))
    (h_last, _), _ = jax.lax.scan(step, init, jnp.transpose(x, (1, 0, 2)))
    return h_last @ w_fc + b_fc


if __name__ == "__main__":
    B, T, D, H, O = 2, 8, 16, 32, 8  # batch, seq, input_dim, hidden_dim, output_dim

    key = jax.random.PRNGKey(0)
    kp, kx = jax.random.split(key)
    params = make_params(kp, D, H, O)
    x = jax.random.normal(kx, (B, T, D), jnp.float32)

    out = jax.block_until_ready(lstm_model_forward(x, params))
    ref = reference_forward(x, params, H)

    assert out.shape == (B, O), out.shape
    assert jnp.allclose(out, ref, atol=1e-2, rtol=1e-2), (out, ref)
    print("KERNEL_OK")
</pallas_src>

<mosaic_0001>
module attributes {stable_mosaic.version = 11 : i64} {
  func.func @lstm_fc_kernel(%arg0: i32, %arg1: i32, %arg2: memref<8x8x16xf32, #tpu.memory_space<vmem>>, %arg3: memref<16x512xf32, #tpu.memory_space<vmem>>, %arg4: memref<128x512xf32, #tpu.memory_space<vmem>>, %arg5: memref<1x512xf32, #tpu.memory_space<vmem>>, %arg6: memref<128x128xf32, #tpu.memory_space<vmem>>, %arg7: memref<1x128xf32, #tpu.memory_space<vmem>>, %arg8: memref<8x128xf32, #tpu.memory_space<vmem>>, %arg9: memref<8x8x512xf32, #tpu.memory_space<vmem>>, %arg10: memref<8x128xf32, #tpu.memory_space<vmem>>, %arg11: memref<8x128xf32, #tpu.memory_space<vmem>>) attributes {dimension_semantics = [#tpu.dimension_semantics<parallel>, #tpu.dimension_semantics<arbitrary>], iteration_bounds = array<i64: 1, 1>, scalar_prefetch = 0 : i64, scratch_operands = 3 : i64, tpu.core_type = #tpu.core_type<tc>, window_params = [{transform_indices = @transform_0, window_bounds = array<i64: 8, 8, 16>}, {pipeline_mode = #tpu.pipeline_mode<synchronous>, transform_indices = @transform_1, window_bounds = array<i64: 16, 512>}, {pipeline_mode = #tpu.pipeline_mode<synchronous>, transform_indices = @transform_2, window_bounds = array<i64: 128, 512>}, {pipeline_mode = #tpu.pipeline_mode<synchronous>, transform_indices = @transform_3, window_bounds = array<i64: 1, 512>}, {pipeline_mode = #tpu.pipeline_mode<synchronous>, transform_indices = @transform_4, window_bounds = array<i64: 128, 128>}, {pipeline_mode = #tpu.pipeline_mode<synchronous>, transform_indices = @transform_5, window_bounds = array<i64: 1, 128>}, {transform_indices = @transform_6, window_bounds = array<i64: 8, 128>}]} {
    %c0_i32 = arith.constant 0 : i32
    %0 = arith.cmpi eq, %arg1, %c0_i32 : i32
    %1 = arith.extui %0 : i1 to i32
    %c0_i32_0 = arith.constant 0 : i32
    %2 = arith.cmpi ne, %1, %c0_i32_0 : i32
    scf.if %2 {
      %cst_133 = arith.constant 0.000000e+00 : f32
      %315 = vector.broadcast %cst_133 : f32 to vector<8x128xf32>
      %c0_134 = arith.constant 0 : index
      %c0_135 = arith.constant 0 : index
      %316 = vector.load %arg10[%c0_134, %c0_135] : memref<8x128xf32, #tpu.memory_space<vmem>>, vector<8x128xf32>
      tpu.vector_store %arg10[%c0_134, %c0_135], %315 {strides = array<i32>} : memref<8x128xf32, #tpu.memory_space<vmem>>, vector<8x128xf32>,
      %cst_136 = arith.constant 0.000000e+00 : f32
      %317 = vector.broadcast %cst_136 : f32 to vector<8x128xf32>
      %c0_137 = arith.constant 0 : index
      %c0_138 = arith.constant 0 : index
      %318 = vector.load %arg11[%c0_137, %c0_138] : memref<8x128xf32, #tpu.memory_space<vmem>>, vector<8x128xf32>
      tpu.vector_store %arg11[%c0_137, %c0_138], %317 {strides = array<i32>} : memref<8x128xf32, #tpu.memory_space<vmem>>, vector<8x128xf32>,
    } else {
    }
    %c0 = arith.constant 0 : index
    %c0_1 = arith.constant 0 : index
    %c0_2 = arith.constant 0 : index
    %3 = vector.load %arg2[%c0, %c0_1, %c0_2] : memref<8x8x16xf32, #tpu.memory_space<vmem>>, vector<8x8x16xf32>
    %4 = vector.shape_cast %3 : vector<8x8x16xf32> to vector<64x16xf32>
    %c0_3 = arith.constant 0 : index
    %c0_4 = arith.constant 0 : index
    %5 = vector.load %arg3[%c0_3, %c0_4] : memref<16x512xf32, #tpu.memory_space<vmem>>, vector<16x512xf32>
    %cst = arith.constant dense<0.000000e+00> : vector<64x512xf32>
    %6 = tpu.matmul %4, %5, %cst {dimension_numbers = #tpu.dot_dimension_numbers<[1], [0], [0], [1], [0, 0, 1, 1], [], []>} : vector<64x16xf32>, vector<16x512xf32>, vector<64x512xf32> -> vector<64x512xf32>
    %c0_5 = arith.constant 0 : index
    %c0_6 = arith.constant 0 : index
    %7 = vector.load %arg5[%c0_5, %c0_6] : memref<1x512xf32, #tpu.memory_space<vmem>>, vector<1x512xf32>
    %8 = vector.broadcast %7 : vector<1x512xf32> to vector<64x512xf32>
    %9 = arith.addf %6, %8 : vector<64x512xf32>
    %10 = vector.shape_cast %9 : vector<64x512xf32> to vector<8x8x512xf32>
    %c0_7 = arith.constant 0 : index
    %c0_8 = arith.constant 0 : index
    %c0_9 = arith.constant 0 : index
    %11 = vector.load %arg9[%c0_7, %c0_8, %c0_9] : memref<8x8x512xf32, #tpu.memory_space<vmem>>, vector<8x8x512xf32>
    tpu.vector_store %arg9[%c0_7, %c0_8, %c0_9], %10 {strides = array<i32>} : memref<8x8x512xf32, #tpu.memory_space<vmem>>, vector<8x8x512xf32>,
    %c0_10 = arith.constant 0 : index
    %c0_11 = arith.constant 0 : index
    %12 = vector.load %arg10[%c0_10, %c0_11] : memref<8x128xf32, #tpu.memory_space<vmem>>, vector<8x128xf32>
    %c0_12 = arith.constant 0 : index
    %c0_13 = arith.constant 0 : index
    %13 = vector.load %arg11[%c0_12, %c0_13] : memref<8x128xf32, #tpu.memory_space<vmem>>, vector<8x128xf32>
    %c0_i32_14 = arith.constant 0 : i32
    %14 = arith.index_cast %c0_i32_14 : i32 to index
    %c0_15 = arith.constant 0 : index
    %c0_16 = arith.constant 0 : index
    %15 = vector.load %arg9[%14, %c0_15, %c0_16] : memref<8x8x512xf32, #tpu.memory_space<vmem>>, vector<1x8x512xf32>
    %16 = vector.shape_cast %15 : vector<1x8x512xf32> to vector<8x512xf32>
    %c0_17 = arith.constant 0 : index
    %c0_18 = arith.constant 0 : index
    %17 = vector.load %arg4[%c0_17, %c0_18] : memref<128x512xf32, #tpu.memory_space<vmem>>, vector<128x512xf32>
    %cst_19 = arith.constant dense<0.000000e+00> : vector<8x512xf32>
    %18 = tpu.matmul %12, %17, %cst_19 {dimension_numbers = #tpu.dot_dimension_numbers<[1], [0], [0], [1], [0, 0, 1, 1], [], []>} : vector<8x128xf32>, vector<128x512xf32>, vector<8x512xf32> -> vector<8x512xf32>
    %19 = arith.addf %16, %18 : vector<8x512xf32>
    %20 = vector.extract_strided_slice %19 {offsets = [0, 0], sizes = [8, 128], strides = [1, 1]} : vector<8x512xf32> to vector<8x128xf32>
    %cst_20 = arith.constant 5.000000e-01 : f32
    %21 = vector.broadcast %cst_20 : f32 to vector<8x128xf32>
    %22 = arith.mulf %21, %20 : vector<8x128xf32>
    %23 = math.tanh %22 : vector<8x128xf32>
    %cst_21 = arith.constant 5.000000e-01 : f32
    %24 = vector.broadcast %cst_21 : f32 to vector<8x128xf32>
    %25 = arith.mulf %24, %23 : vector<8x128xf32>
    %cst_22 = arith.constant 5.000000e-01 : f32
    %26 = vector.broadcast %cst_22 : f32 to vector<8x128xf32>
    %27 = arith.addf %25, %26 : vector<8x128xf32>
    %28 = vector.extract_strided_slice %19 {offsets = [0, 128], sizes = [8, 128], strides = [1, 1]} : vector<8x512xf32> to vector<8x128xf32>
    %cst_23 = arith.constant 5.000000e-01 : f32
    %29 = vector.broadcast %cst_23 : f32 to vector<8x128xf32>
    %30 = arith.mulf %29, %28 : vector<8x128xf32>
    %31 = math.tanh %30 : vector<8x128xf32>
    %cst_24 = arith.constant 5.000000e-01 : f32
    %32 = vector.broadcast %cst_24 : f32 to vector<8x128xf32>
    %33 = arith.mulf %32, %31 : vector<8x128xf32>
    %cst_25 = arith.constant 5.000000e-01 : f32
    %34 = vector.broadcast %cst_25 : f32 to vector<8x128xf32>
    %35 = arith.addf %33, %34 : vector<8x128xf32>
    %36 = vector.extract_strided_slice %19 {offsets = [0, 256], sizes = [8, 128], strides = [1, 1]} : vector<8x512xf32> to vector<8x128xf32>
    %37 = math.tanh %36 : vector<8x128xf32>
    %38 = vector.extract_strided_slice %19 {offsets = [0, 384], sizes = [8, 128], strides = [1, 1]} : vector<8x512xf32> to vector<8x128xf32>
    %cst_26 = arith.constant 5.000000e-01 : f32
    %39 = vector.broadcast %cst_26 : f32 to vector<8x128xf32>
    %40 = arith.mulf %39, %38 : vector<8x128xf32>
    %41 = math.tanh %40 : vector<8x128xf32>
    %cst_27 = arith.constant 5.000000e-01 : f32
    %42 = vector.broadcast %cst_27 : f32 to vector<8x128xf32>
    %43 = arith.mulf %42, %41 : vector<8x128xf32>
    %cst_28 = arith.constant 5.000000e-01 : f32
    %44 = vector.broadcast %cst_28 : f32 to vector<8x128xf32>
    %45 = arith.addf %43, %44 : vector<8x128xf32>
    %46 = arith.mulf %35, %13 : vector<8x128xf32>
    %47 = arith.mulf %27, %37 : vector<8x128xf32>
    %48 = arith.addf %46, %47 : vector<8x128xf32>
    %49 = math.tanh %48 : vector<8x128xf32>
    %50 = arith.mulf %45, %49 : vector<8x128xf32>
    %c1_i32 = arith.constant 1 : i32
    %51 = arith.index_cast %c1_i32 : i32 to index
    %c0_29 = arith.constant 0 : index
    %c0_30 = arith.constant 0 : index
    %52 = vector.load %arg9[%51, %c0_29, %c0_30] : memref<8x8x512xf32, #tpu.memory_space<vmem>>, vector<1x8x512xf32>
    %53 = vector.shape_cast %52 : vector<1x8x512xf32> to vector<8x512xf32>
    %c0_31 = arith.constant 0 : index
    %c0_32 = arith.constant 0 : index
    %54 = vector.load %arg4[%c0_31, %c0_32] : memref<128x512xf32, #tpu.memory_space<vmem>>, vector<128x512xf32>
    %cst_33 = arith.constant dense<0.000000e+00> : vector<8x512xf32>
    %55 = tpu.matmul %50, %54, %cst_33 {dimension_numbers = #tpu.dot_dimension_numbers<[1], [0], [0], [1], [0, 0, 1, 1], [], []>} : vector<8x128xf32>, vector<128x512xf32>, vector<8x512xf32> -> vector<8x512xf32>
    %56 = arith.addf %53, %55 : vector<8x512xf32>
    %57 = vector.extract_strided_slice %56 {offsets = [0, 0], sizes = [8, 128], strides = [1, 1]} : vector<8x512xf32> to vector<8x128xf32>
    %cst_34 = arith.constant 5.000000e-01 : f32
    %58 = vector.broadcast %cst_34 : f32 to vector<8x128xf32>
    %59 = arith.mulf %58, %57 : vector<8x128xf32>
    %60 = math.tanh %59 : vector<8x128xf32>
    %cst_35 = arith.constant 5.000000e-01 : f32
    %61 = vector.broadcast %cst_35 : f32 to vector<8x128xf32>
    %62 = arith.mulf %61, %60 : vector<8x128xf32>
    %cst_36 = arith.constant 5.000000e-01 : f32
    %63 = vector.broadcast %cst_36 : f32 to vector<8x128xf32>
    %64 = arith.addf %62, %63 : vector<8x128xf32>
    %65 = vector.extract_strided_slice %56 {offsets = [0, 128], sizes = [8, 128], strides = [1, 1]} : vector<8x512xf32> to vector<8x128xf32>
    %cst_37 = arith.constant 5.000000e-01 : f32
    %66 = vector.broadcast %cst_37 : f32 to vector<8x128xf32>
    %67 = arith.mulf %66, %65 : vector<8x128xf32>
    %68 = math.tanh %67 : vector<8x128xf32>
    %cst_38 = arith.constant 5.000000e-01 : f32
    %69 = vector.broadcast %cst_38 : f32 to vector<8x128xf32>
    %70 = arith.mulf %69, %68 : vector<8x128xf32>
    %cst_39 = arith.constant 5.000000e-01 : f32
    %71 = vector.broadcast %cst_39 : f32 to vector<8x128xf32>
    %72 = arith.addf %70, %71 : vector<8x128xf32>
    %73 = vector.extract_strided_slice %56 {offsets = [0, 256], sizes = [8, 128], strides = [1, 1]} : vector<8x512xf32> to vector<8x128xf32>
    %74 = math.tanh %73 : vector<8x128xf32>
    %75 = vector.extract_strided_slice %56 {offsets = [0, 384], sizes = [8, 128], strides = [1, 1]} : vector<8x512xf32> to vector<8x128xf32>
    %cst_40 = arith.constant 5.000000e-01 : f32
    %76 = vector.broadcast %cst_40 : f32 to vector<8x128xf32>
    %77 = arith.mulf %76, %75 : vector<8x128xf32>
    %78 = math.tanh %77 : vector<8x128xf32>
    %cst_41 = arith.constant 5.000000e-01 : f32
    %79 = vector.broadcast %cst_41 : f32 to vector<8x128xf32>
    %80 = arith.mulf %79, %78 : vector<8x128xf32>
    %cst_42 = arith.constant 5.000000e-01 : f32
    %81 = vector.broadcast %cst_42 : f32 to vector<8x128xf32>
    %82 = arith.addf %80, %81 : vector<8x128xf32>
    %83 = arith.mulf %72, %48 : vector<8x128xf32>
    %84 = arith.mulf %64, %74 : vector<8x128xf32>
    %85 = arith.addf %83, %84 : vector<8x128xf32>
    %86 = math.tanh %85 : vector<8x128xf32>
    %87 = arith.mulf %82, %86 : vector<8x128xf32>
    %c2_i32 = arith.constant 2 : i32
    %88 = arith.index_cast %c2_i32 : i32 to index
    %c0_43 = arith.constant 0 : index
    %c0_44 = arith.constant 0 : index
    %89 = vector.load %arg9[%88, %c0_43, %c0_44] : memref<8x8x512xf32, #tpu.memory_space<vmem>>, vector<1x8x512xf32>
    %90 = vector.shape_cast %89 : vector<1x8x512xf32> to vector<8x512xf32>
    %c0_45 = arith.constant 0 : index
    %c0_46 = arith.constant 0 : index
    %91 = vector.load %arg4[%c0_45, %c0_46] : memref<128x512xf32, #tpu.memory_space<vmem>>, vector<128x512xf32>
    %cst_47 = arith.constant dense<0.000000e+00> : vector<8x512xf32>
    %92 = tpu.matmul %87, %91, %cst_47 {dimension_numbers = #tpu.dot_dimension_numbers<[1], [0], [0], [1], [0, 0, 1, 1], [], []>} : vector<8x128xf32>, vector<128x512xf32>, vector<8x512xf32> -> vector<8x512xf32>
    %93 = arith.addf %90, %92 : vector<8x512xf32>
    %94 = vector.extract_strided_slice %93 {offsets = [0, 0], sizes = [8, 128], strides = [1, 1]} : vector<8x512xf32> to vector<8x128xf32>
    %cst_48 = arith.constant 5.000000e-01 : f32
    %95 = vector.broadcast %cst_48 : f32 to vector<8x128xf32>
    %96 = arith.mulf %95, %94 : vector<8x128xf32>
    %97 = math.tanh %96 : vector<8x128xf32>
    %cst_49 = arith.constant 5.000000e-01 : f32
    %98 = vector.broadcast %cst_49 : f32 to vector<8x128xf32>
    %99 = arith.mulf %98, %97 : vector<8x128xf32>
    %cst_50 = arith.constant 5.000000e-01 : f32
    %100 = vector.broadcast %cst_50 : f32 to vector<8x128xf32>
    %101 = arith.addf %99, %100 : vector<8x128xf32>
    %102 = vector.extract_strided_slice %93 {offsets = [0, 128], sizes = [8, 128], strides = [1, 1]} : vector<8x512xf32> to vector<8x128xf32>
    %cst_51 = arith.constant 5.000000e-01 : f32
    %103 = vector.broadcast %cst_51 : f32 to vector<8x128xf32>
    %104 = arith.mulf %103, %102 : vector<8x128xf32>
    %105 = math.tanh %104 : vector<8x128xf32>
    %cst_52 = arith.constant 5.000000e-01 : f32
    %106 = vector.broadcast %cst_52 : f32 to vector<8x128xf32>
    %107 = arith.mulf %106, %105 : vector<8x128xf32>
    %cst_53 = arith.constant 5.000000e-01 : f32
    %108 = vector.broadcast %cst_53 : f32 to vector<8x128xf32>
    %109 = arith.addf %107, %108 : vector<8x128xf32>
    %110 = vector.extract_strided_slice %93 {offsets = [0, 256], sizes = [8, 128], strides = [1, 1]} : vector<8x512xf32> to vector<8x128xf32>
    %111 = math.tanh %110 : vector<8x128xf32>
    %112 = vector.extract_strided_slice %93 {offsets = [0, 384], sizes = [8, 128], strides = [1, 1]} : vector<8x512xf32> to vector<8x128xf32>
    %cst_54 = arith.constant 5.000000e-01 : f32
    %113 = vector.broadcast %cst_54 : f32 to vector<8x128xf32>
    %114 = arith.mulf %113, %112 : vector<8x128xf32>
    %115 = math.tanh %114 : vector<8x128xf32>
    %cst_55 = arith.constant 5.000000e-01 : f32
    %116 = vector.broadcast %cst_55 : f32 to vector<8x128xf32>
    %117 = arith.mulf %116, %115 : vector<8x128xf32>
    %cst_56 = arith.constant 5.000000e-01 : f32
    %118 = vector.broadcast %cst_56 : f32 to vector<8x128xf32>
    %119 = arith.addf %117, %118 : vector<8x128xf32>
    %120 = arith.mulf %109, %85 : vector<8x128xf32>
    %121 = arith.mulf %101, %111 : vector<8x128xf32>
    %122 = arith.addf %120, %121 : vector<8x128xf32>
    %123 = math.tanh %122 : vector<8x128xf32>
    %124 = arith.mulf %119, %123 : vector<8x128xf32>
    %c3_i32 = arith.constant 3 : i32
    %125 = arith.index_cast %c3_i32 : i32 to index
    %c0_57 = arith.constant 0 : index
    %c0_58 = arith.constant 0 : index
    %126 = vector.load %arg9[%125, %c0_57, %c0_58] : memref<8x8x512xf32, #tpu.memory_space<vmem>>, vector<1x8x512xf32>
    %127 = vector.shape_cast %126 : vector<1x8x512xf32> to vector<8x512xf32>
    %c0_59 = arith.constant 0 : index
    %c0_60 = arith.constant 0 : index
    %128 = vector.load %arg4[%c0_59, %c0_60] : memref<128x512xf32, #tpu.memory_space<vmem>>, vector<128x512xf32>
    %cst_61 = arith.constant dense<0.000000e+00> : vector<8x512xf32>
    %129 = tpu.matmul %124, %128, %cst_61 {dimension_numbers = #tpu.dot_dimension_numbers<[1], [0], [0], [1], [0, 0, 1, 1], [], []>} : vector<8x128xf32>, vector<128x512xf32>, vector<8x512xf32> -> vector<8x512xf32>
    %130 = arith.addf %127, %129 : vector<8x512xf32>
    %131 = vector.extract_strided_slice %130 {offsets = [0, 0], sizes = [8, 128], strides = [1, 1]} : vector<8x512xf32> to vector<8x128xf32>
    %cst_62 = arith.constant 5.000000e-01 : f32
    %132 = vector.broadcast %cst_62 : f32 to vector<8x128xf32>
    %133 = arith.mulf %132, %131 : vector<8x128xf32>
    %134 = math.tanh %133 : vector<8x128xf32>
    %cst_63 = arith.constant 5.000000e-01 : f32
    %135 = vector.broadcast %cst_63 : f32 to vector<8x128xf32>
    %136 = arith.mulf %135, %134 : vector<8x128xf32>
    %cst_64 = arith.constant 5.000000e-01 : f32
    %137 = vector.broadcast %cst_64 : f32 to vector<8x128xf32>
    %138 = arith.addf %136, %137 : vector<8x128xf32>
    %139 = vector.extract_strided_slice %130 {offsets = [0, 128], sizes = [8, 128], strides = [1, 1]} : vector<8x512xf32> to vector<8x128xf32>
    %cst_65 = arith.constant 5.000000e-01 : f32
    %140 = vector.broadcast %cst_65 : f32 to vector<8x128xf32>
    %141 = arith.mulf %140, %139 : vector<8x128xf32>
    %142 = math.tanh %141 : vector<8x128xf32>
    %cst_66 = arith.constant 5.000000e-01 : f32
    %143 = vector.broadcast %cst_66 : f32 to vector<8x128xf32>
    %144 = arith.mulf %143, %142 : vector<8x128xf32>
    %cst_67 = arith.constant 5.000000e-01 : f32
    %145 = vector.broadcast %cst_67 : f32 to vector<8x128xf32>
    %146 = arith.addf %144, %145 : vector<8x128xf32>
    %147 = vector.extract_strided_slice %130 {offsets = [0, 256], sizes = [8, 128], strides = [1, 1]} : vector<8x512xf32> to vector<8x128xf32>
    %148 = math.tanh %147 : vector<8x128xf32>
    %149 = vector.extract_strided_slice %130 {offsets = [0, 384], sizes = [8, 128], strides = [1, 1]} : vector<8x512xf32> to vector<8x128xf32>
    %cst_68 = arith.constant 5.000000e-01 : f32
    %150 = vector.broadcast %cst_68 : f32 to vector<8x128xf32>
    %151 = arith.mulf %150, %149 : vector<8x128xf32>
    %152 = math.tanh %151 : vector<8x128xf32>
    %cst_69 = arith.constant 5.000000e-01 : f32
    %153 = vector.broadcast %cst_69 : f32 to vector<8x128xf32>
    %154 = arith.mulf %153, %152 : vector<8x128xf32>
    %cst_70 = arith.constant 5.000000e-01 : f32
    %155 = vector.broadcast %cst_70 : f32 to vector<8x128xf32>
    %156 = arith.addf %154, %155 : vector<8x128xf32>
    %157 = arith.mulf %146, %122 : vector<8x128xf32>
    %158 = arith.mulf %138, %148 : vector<8x128xf32>
    %159 = arith.addf %157, %158 : vector<8x128xf32>
    %160 = math.tanh %159 : vector<8x128xf32>
    %161 = arith.mulf %156, %160 : vector<8x128xf32>
    %c4_i32 = arith.constant 4 : i32
    %162 = arith.index_cast %c4_i32 : i32 to index
    %c0_71 = arith.constant 0 : index
    %c0_72 = arith.constant 0 : index
    %163 = vector.load %arg9[%162, %c0_71, %c0_72] : memref<8x8x512xf32, #tpu.memory_space<vmem>>, vector<1x8x512xf32>
    %164 = vector.shape_cast %163 : vector<1x8x512xf32> to vector<8x512xf32>
    %c0_73 = arith.constant 0 : index
    %c0_74 = arith.constant 0 : index
    %165 = vector.load %arg4[%c0_73, %c0_74] : memref<128x512xf32, #tpu.memory_space<vmem>>, vector<128x512xf32>
    %cst_75 = arith.constant dense<0.000000e+00> : vector<8x512xf32>
    %166 = tpu.matmul %161, %165, %cst_75 {dimension_numbers = #tpu.dot_dimension_numbers<[1], [0], [0], [1], [0, 0, 1, 1], [], []>} : vector<8x128xf32>, vector<128x512xf32>, vector<8x512xf32> -> vector<8x512xf32>
    %167 = arith.addf %164, %166 : vector<8x512xf32>
    %168 = vector.extract_strided_slice %167 {offsets = [0, 0], sizes = [8, 128], strides = [1, 1]} : vector<8x512xf32> to vector<8x128xf32>
    %cst_76 = arith.constant 5.000000e-01 : f32
    %169 = vector.broadcast %cst_76 : f32 to vector<8x128xf32>
    %170 = arith.mulf %169, %168 : vector<8x128xf32>
    %171 = math.tanh %170 : vector<8x128xf32>
    %cst_77 = arith.constant 5.000000e-01 : f32
    %172 = vector.broadcast %cst_77 : f32 to vector<8x128xf32>
    %173 = arith.mulf %172, %171 : vector<8x128xf32>
    %cst_78 = arith.constant 5.000000e-01 : f32
    %174 = vector.broadcast %cst_78 : f32 to vector<8x128xf32>
    %175 = arith.addf %173, %174 : vector<8x128xf32>
    %176 = vector.extract_strided_slice %167 {offsets = [0, 128], sizes = [8, 128], strides = [1, 1]} : vector<8x512xf32> to vector<8x128xf32>
    %cst_79 = arith.constant 5.000000e-01 : f32
    %177 = vector.broadcast %cst_79 : f32 to vector<8x128xf32>
    %178 = arith.mulf %177, %176 : vector<8x128xf32>
    %179 = math.tanh %178 : vector<8x128xf32>
    %cst_80 = arith.constant 5.000000e-01 : f32
    %180 = vector.broadcast %cst_80 : f32 to vector<8x128xf32>
    %181 = arith.mulf %180, %179 : vector<8x128xf32>
    %cst_81 = arith.constant 5.000000e-01 : f32
    %182 = vector.broadcast %cst_81 : f32 to vector<8x128xf32>
    %183 = arith.addf %181, %182 : vector<8x128xf32>
    %184 = vector.extract_strided_slice %167 {offsets = [0, 256], sizes = [8, 128], strides = [1, 1]} : vector<8x512xf32> to vector<8x128xf32>
    %185 = math.tanh %184 : vector<8x128xf32>
    %186 = vector.extract_strided_slice %167 {offsets = [0, 384], sizes = [8, 128], strides = [1, 1]} : vector<8x512xf32> to vector<8x128xf32>
    %cst_82 = arith.constant 5.000000e-01 : f32
    %187 = vector.broadcast %cst_82 : f32 to vector<8x128xf32>
    %188 = arith.mulf %187, %186 : vector<8x128xf32>
    %189 = math.tanh %188 : vector<8x128xf32>
    %cst_83 = arith.constant 5.000000e-01 : f32
    %190 = vector.broadcast %cst_83 : f32 to vector<8x128xf32>
    %191 = arith.mulf %190, %189 : vector<8x128xf32>
    %cst_84 = arith.constant 5.000000e-01 : f32
    %192 = vector.broadcast %cst_84 : f32 to vector<8x128xf32>
    %193 = arith.addf %191, %192 : vector<8x128xf32>
    %194 = arith.mulf %183, %159 : vector<8x128xf32>
    %195 = arith.mulf %175, %185 : vector<8x128xf32>
    %196 = arith.addf %194, %195 : vector<8x128xf32>
    %197 = math.tanh %196 : vector<8x128xf32>
    %198 = arith.mulf %193, %197 : vector<8x128xf32>
    %c5_i32 = arith.constant 5 : i32
    %199 = arith.index_cast %c5_i32 : i32 to index
    %c0_85 = arith.constant 0 : index
    %c0_86 = arith.constant 0 : index
    %200 = vector.load %arg9[%199, %c0_85, %c0_86] : memref<8x8x512xf32, #tpu.memory_space<vmem>>, vector<1x8x512xf32>
    %201 = vector.shape_cast %200 : vector<1x8x512xf32> to vector<8x512xf32>
    %c0_87 = arith.constant 0 : index
    %c0_88 = arith.constant 0 : index
    %202 = vector.load %arg4[%c0_87, %c0_88] : memref<128x512xf32, #tpu.memory_space<vmem>>, vector<128x512xf32>
    %cst_89 = arith.constant dense<0.000000e+00> : vector<8x512xf32>
    %203 = tpu.matmul %198, %202, %cst_89 {dimension_numbers = #tpu.dot_dimension_numbers<[1], [0], [0], [1], [0, 0, 1, 1], [], []>} : vector<8x128xf32>, vector<128x512xf32>, vector<8x512xf32> -> vector<8x512xf32>
    %204 = arith.addf %201, %203 : vector<8x512xf32>
    %205 = vector.extract_strided_slice %204 {offsets = [0, 0], sizes = [8, 128], strides = [1, 1]} : vector<8x512xf32> to vector<8x128xf32>
    %cst_90 = arith.constant 5.000000e-01 : f32
    %206 = vector.broadcast %cst_90 : f32 to vector<8x128xf32>
    %207 = arith.mulf %206, %205 : vector<8x128xf32>
    %208 = math.tanh %207 : vector<8x128xf32>
    %cst_91 = arith.constant 5.000000e-01 : f32
    %209 = vector.broadcast %cst_91 : f32 to vector<8x128xf32>
    %210 = arith.mulf %209, %208 : vector<8x128xf32>
    %cst_92 = arith.constant 5.000000e-01 : f32
    %211 = vector.broadcast %cst_92 : f32 to vector<8x128xf32>
    %212 = arith.addf %210, %211 : vector<8x128xf32>
    %213 = vector.extract_strided_slice %204 {offsets = [0, 128], sizes = [8, 128], strides = [1, 1]} : vector<8x512xf32> to vector<8x128xf32>
    %cst_93 = arith.constant 5.000000e-01 : f32
    %214 = vector.broadcast %cst_93 : f32 to vector<8x128xf32>
    %215 = arith.mulf %214, %213 : vector<8x128xf32>
    %216 = math.tanh %215 : vector<8x128xf32>
    %cst_94 = arith.constant 5.000000e-01 : f32
    %217 = vector.broadcast %cst_94 : f32 to vector<8x128xf32>
    %218 = arith.mulf %217, %216 : vector<8x128xf32>
    %cst_95 = arith.constant 5.000000e-01 : f32
    %219 = vector.broadcast %cst_95 : f32 to vector<8x128xf32>
    %220 = arith.addf %218, %219 : vector<8x128xf32>
    %221 = vector.extract_strided_slice %204 {offsets = [0, 256], sizes = [8, 128], strides = [1, 1]} : vector<8x512xf32> to vector<8x128xf32>
    %222 = math.tanh %221 : vector<8x128xf32>
    %223 = vector.extract_strided_slice %204 {offsets = [0, 384], sizes = [8, 128], strides = [1, 1]} : vector<8x512xf32> to vector<8x128xf32>
    %cst_96 = arith.constant 5.000000e-01 : f32
    %224 = vector.broadcast %cst_96 : f32 to vector<8x128xf32>
    %225 = arith.mulf %224, %223 : vector<8x128xf32>
    %226 = math.tanh %225 : vector<8x128xf32>
    %cst_97 = arith.constant 5.000000e-01 : f32
    %227 = vector.broadcast %cst_97 : f32 to vector<8x128xf32>
    %228 = arith.mulf %227, %226 : vector<8x128xf32>
    %cst_98 = arith.constant 5.000000e-01 : f32
    %229 = vector.broadcast %cst_98 : f32 to vector<8x128xf32>
    %230 = arith.addf %228, %229 : vector<8x128xf32>
    %231 = arith.mulf %220, %196 : vector<8x128xf32>
    %232 = arith.mulf %212, %222 : vector<8x128xf32>
    %233 = arith.addf %231, %232 : vector<8x128xf32>
    %234 = math.tanh %233 : vector<8x128xf32>
    %235 = arith.mulf %230, %234 : vector<8x128xf32>
    %c6_i32 = arith.constant 6 : i32
    %236 = arith.index_cast %c6_i32 : i32 to index
    %c0_99 = arith.constant 0 : index
    %c0_100 = arith.constant 0 : index
    %237 = vector.load %arg9[%236, %c0_99, %c0_100] : memref<8x8x512xf32, #tpu.memory_space<vmem>>, vector<1x8x512xf32>
    %238 = vector.shape_cast %237 : vector<1x8x512xf32> to vector<8x512xf32>
    %c0_101 = arith.constant 0 : index
    %c0_102 = arith.constant 0 : index
    %239 = vector.load %arg4[%c0_101, %c0_102] : memref<128x512xf32, #tpu.memory_space<vmem>>, vector<128x512xf32>
    %cst_103 = arith.constant dense<0.000000e+00> : vector<8x512xf32>
    %240 = tpu.matmul %235, %239, %cst_103 {dimension_numbers = #tpu.dot_dimension_numbers<[1], [0], [0], [1], [0, 0, 1, 1], [], []>} : vector<8x128xf32>, vector<128x512xf32>, vector<8x512xf32> -> vector<8x512xf32>
    %241 = arith.addf %238, %240 : vector<8x512xf32>
    %242 = vector.extract_strided_slice %241 {offsets = [0, 0], sizes = [8, 128], strides = [1, 1]} : vector<8x512xf32> to vector<8x128xf32>
    %cst_104 = arith.constant 5.000000e-01 : f32
    %243 = vector.broadcast %cst_104 : f32 to vector<8x128xf32>
    %244 = arith.mulf %243, %242 : vector<8x128xf32>
    %245 = math.tanh %244 : vector<8x128xf32>
    %cst_105 = arith.constant 5.000000e-01 : f32
    %246 = vector.broadcast %cst_105 : f32 to vector<8x128xf32>
    %247 = arith.mulf %246, %245 : vector<8x128xf32>
    %cst_106 = arith.constant 5.000000e-01 : f32
    %248 = vector.broadcast %cst_106 : f32 to vector<8x128xf32>
    %249 = arith.addf %247, %248 : vector<8x128xf32>
    %250 = vector.extract_strided_slice %241 {offsets = [0, 128], sizes = [8, 128], strides = [1, 1]} : vector<8x512xf32> to vector<8x128xf32>
    %cst_107 = arith.constant 5.000000e-01 : f32
    %251 = vector.broadcast %cst_107 : f32 to vector<8x128xf32>
    %252 = arith.mulf %251, %250 : vector<8x128xf32>
    %253 = math.tanh %252 : vector<8x128xf32>
    %cst_108 = arith.constant 5.000000e-01 : f32
    %254 = vector.broadcast %cst_108 : f32 to vector<8x128xf32>
    %255 = arith.mulf %254, %253 : vector<8x128xf32>
    %cst_109 = arith.constant 5.000000e-01 : f32
    %256 = vector.broadcast %cst_109 : f32 to vector<8x128xf32>
    %257 = arith.addf %255, %256 : vector<8x128xf32>
    %258 = vector.extract_strided_slice %241 {offsets = [0, 256], sizes = [8, 128], strides = [1, 1]} : vector<8x512xf32> to vector<8x128xf32>
    %259 = math.tanh %258 : vector<8x128xf32>
    %260 = vector.extract_strided_slice %241 {offsets = [0, 384], sizes = [8, 128], strides = [1, 1]} : vector<8x512xf32> to vector<8x128xf32>
    %cst_110 = arith.constant 5.000000e-01 : f32
    %261 = vector.broadcast %cst_110 : f32 to vector<8x128xf32>
    %262 = arith.mulf %261, %260 : vector<8x128xf32>
    %263 = math.tanh %262 : vector<8x128xf32>
    %cst_111 = arith.constant 5.000000e-01 : f32
    %264 = vector.broadcast %cst_111 : f32 to vector<8x128xf32>
    %265 = arith.mulf %264, %263 : vector<8x128xf32>
    %cst_112 = arith.constant 5.000000e-01 : f32
    %266 = vector.broadcast %cst_112 : f32 to vector<8x128xf32>
    %267 = arith.addf %265, %266 : vector<8x128xf32>
    %268 = arith.mulf %257, %233 : vector<8x128xf32>
    %269 = arith.mulf %249, %259 : vector<8x128xf32>
    %270 = arith.addf %268, %269 : vector<8x128xf32>
    %271 = math.tanh %270 : vector<8x128xf32>
    %272 = arith.mulf %267, %271 : vector<8x128xf32>
    %c7_i32 = arith.constant 7 : i32
    %273 = arith.index_cast %c7_i32 : i32 to index
    %c0_113 = arith.constant 0 : index
    %c0_114 = arith.constant 0 : index
    %274 = vector.load %arg9[%273, %c0_113, %c0_114] : memref<8x8x512xf32, #tpu.memory_space<vmem>>, vector<1x8x512xf32>
    %275 = vector.shape_cast %274 : vector<1x8x512xf32> to vector<8x512xf32>
    %c0_115 = arith.constant 0 : index
    %c0_116 = arith.constant 0 : index
    %276 = vector.load %arg4[%c0_115, %c0_116] : memref<128x512xf32, #tpu.memory_space<vmem>>, vector<128x512xf32>
    %cst_117 = arith.constant dense<0.000000e+00> : vector<8x512xf32>
    %277 = tpu.matmul %272, %276, %cst_117 {dimension_numbers = #tpu.dot_dimension_numbers<[1], [0], [0], [1], [0, 0, 1, 1], [], []>} : vector<8x128xf32>, vector<128x512xf32>, vector<8x512xf32> -> vector<8x512xf32>
    %278 = arith.addf %275, %277 : vector<8x512xf32>
    %279 = vector.extract_strided_slice %278 {offsets = [0, 0], sizes = [8, 128], strides = [1, 1]} : vector<8x512xf32> to vector<8x128xf32>
    %cst_118 = arith.constant 5.000000e-01 : f32
    %280 = vector.broadcast %cst_118 : f32 to vector<8x128xf32>
    %281 = arith.mulf %280, %279 : vector<8x128xf32>
    %282 = math.tanh %281 : vector<8x128xf32>
    %cst_119 = arith.constant 5.000000e-01 : f32
    %283 = vector.broadcast %cst_119 : f32 to vector<8x128xf32>
    %284 = arith.mulf %283, %282 : vector<8x128xf32>
    %cst_120 = arith.constant 5.000000e-01 : f32
    %285 = vector.broadcast %cst_120 : f32 to vector<8x128xf32>
    %286 = arith.addf %284, %285 : vector<8x128xf32>
    %287 = vector.extract_strided_slice %278 {offsets = [0, 128], sizes = [8, 128], strides = [1, 1]} : vector<8x512xf32> to vector<8x128xf32>
    %cst_121 = arith.constant 5.000000e-01 : f32
    %288 = vector.broadcast %cst_121 : f32 to vector<8x128xf32>
    %289 = arith.mulf %288, %287 : vector<8x128xf32>
    %290 = math.tanh %289 : vector<8x128xf32>
    %cst_122 = arith.constant 5.000000e-01 : f32
    %291 = vector.broadcast %cst_122 : f32 to vector<8x128xf32>
    %292 = arith.mulf %291, %290 : vector<8x128xf32>
    %cst_123 = arith.constant 5.000000e-01 : f32
    %293 = vector.broadcast %cst_123 : f32 to vector<8x128xf32>
    %294 = arith.addf %292, %293 : vector<8x128xf32>
    %295 = vector.extract_strided_slice %278 {offsets = [0, 256], sizes = [8, 128], strides = [1, 1]} : vector<8x512xf32> to vector<8x128xf32>
    %296 = math.tanh %295 : vector<8x128xf32>
    %297 = vector.extract_strided_slice %278 {offsets = [0, 384], sizes = [8, 128], strides = [1, 1]} : vector<8x512xf32> to vector<8x128xf32>
    %cst_124 = arith.constant 5.000000e-01 : f32
    %298 = vector.broadcast %cst_124 : f32 to vector<8x128xf32>
    %299 = arith.mulf %298, %297 : vector<8x128xf32>
    %300 = math.tanh %299 : vector<8x128xf32>
    %cst_125 = arith.constant 5.000000e-01 : f32
    %301 = vector.broadcast %cst_125 : f32 to vector<8x128xf32>
    %302 = arith.mulf %301, %300 : vector<8x128xf32>
    %cst_126 = arith.constant 5.000000e-01 : f32
    %303 = vector.broadcast %cst_126 : f32 to vector<8x128xf32>
    %304 = arith.addf %302, %303 : vector<8x128xf32>
    %305 = arith.mulf %294, %270 : vector<8x128xf32>
    %306 = arith.mulf %286, %296 : vector<8x128xf32>
    %307 = arith.addf %305, %306 : vector<8x128xf32>
    %308 = math.tanh %307 : vector<8x128xf32>
    %309 = arith.mulf %304, %308 : vector<8x128xf32>
    %c8_i32 = arith.constant 8 : i32
    %c0_127 = arith.constant 0 : index
    %c0_128 = arith.constant 0 : index
    %310 = vector.load %arg10[%c0_127, %c0_128] : memref<8x128xf32, #tpu.memory_space<vmem>>, vector<8x128xf32>
    tpu.vector_store %arg10[%c0_127, %c0_128], %309 {strides = array<i32>} : memref<8x128xf32, #tpu.memory_space<vmem>>, vector<8x128xf32>,
    %c0_129 = arith.constant 0 : index
    %c0_130 = arith.constant 0 : index
    %311 = vector.load %arg11[%c0_129, %c0_130] : memref<8x128xf32, #tpu.memory_space<vmem>>, vector<8x128xf32>
    tpu.vector_store %arg11[%c0_129, %c0_130], %307 {strides = array<i32>} : memref<8x128xf32, #tpu.memory_space<vmem>>, vector<8x128xf32>,
    %c0_i32_131 = arith.constant 0 : i32
    %312 = arith.cmpi eq, %arg1, %c0_i32_131 : i32
    %313 = arith.extui %312 : i1 to i32
    %c0_i32_132 = arith.constant 0 : i32
    %314 = arith.cmpi ne, %313, %c0_i32_132 : i32
    scf.if %314 {
      %c0_133 = arith.constant 0 : index
      %c0_134 = arith.constant 0 : index
      %315 = vector.load %arg6[%c0_133, %c0_134] : memref<128x128xf32, #tpu.memory_space<vmem>>, vector<128x128xf32>
      %cst_135 = arith.constant dense<0.000000e+00> : vector<8x128xf32>
      %316 = tpu.matmul %309, %315, %cst_135 {dimension_numbers = #tpu.dot_dimension_numbers<[1], [0], [0], [1], [0, 0, 1, 1], [], []>} : vector<8x128xf32>, vector<128x128xf32>, vector<8x128xf32> -> vector<8x128xf32>
      %c0_136 = arith.constant 0 : index
      %c0_137 = arith.constant 0 : index
      %317 = vector.load %arg7[%c0_136, %c0_137] : memref<1x128xf32, #tpu.memory_space<vmem>>, vector<1x128xf32>
      %318 = vector.broadcast %317 : vector<1x128xf32> to vector<8x128xf32>
      %319 = arith.addf %316, %318 : vector<8x128xf32>
      %c0_138 = arith.constant 0 : index
      %c0_139 = arith.constant 0 : index
      %320 = vector.load %arg8[%c0_138, %c0_139] : memref<8x128xf32, #tpu.memory_space<vmem>>, vector<8x128xf32>
      tpu.vector_store %arg8[%c0_138, %c0_139], %319 {strides = array<i32>} : memref<8x128xf32, #tpu.memory_space<vmem>>, vector<8x128xf32>,
    } else {
    }
    return
  }
  func.func @transform_0(%arg0: i32, %arg1: i32) -> (i32, i32, i32) {
    %c0_i32 = arith.constant 0 : i32
    %c0_i32_0 = arith.constant 0 : i32
    return %arg1, %arg0, %c0_i32 : i32, i32, i32
  }
  func.func @transform_1(%arg0: i32, %arg1: i32) -> (i32, i32) {
    %c0_i32 = arith.constant 0 : i32
    %c0_i32_0 = arith.constant 0 : i32
    %c0_i32_1 = arith.constant 0 : i32
    return %c0_i32, %c0_i32_0 : i32, i32
  }
  func.func @transform_2(%arg0: i32, %arg1: i32) -> (i32, i32) {
    %c0_i32 = arith.constant 0 : i32
    %c0_i32_0 = arith.constant 0 : i32
    %c0_i32_1 = arith.constant 0 : i32
    return %c0_i32, %c0_i32_0 : i32, i32
  }
  func.func @transform_3(%arg0: i32, %arg1: i32) -> (i32, i32) {
    %c0_i32 = arith.constant 0 : i32
    %c0_i32_0 = arith.constant 0 : i32
    %c0_i32_1 = arith.constant 0 : i32
    return %c0_i32, %c0_i32_0 : i32, i32
  }
  func.func @transform_4(%arg0: i32, %arg1: i32) -> (i32, i32) {
    %c0_i32 = arith.constant 0 : i32
    %c0_i32_0 = arith.constant 0 : i32
    %c0_i32_1 = arith.constant 0 : i32
    return %c0_i32, %c0_i32_0 : i32, i32
  }
  func.func @transform_5(%arg0: i32, %arg1: i32) -> (i32, i32) {
    %c0_i32 = arith.constant 0 : i32
    %c0_i32_0 = arith.constant 0 : i32
    %c0_i32_1 = arith.constant 0 : i32
    return %c0_i32, %c0_i32_0 : i32, i32
  }
  func.func @transform_6(%arg0: i32, %arg1: i32) -> (i32, i32) {
    %c0_i32 = arith.constant 0 : i32
    %c0_i32_0 = arith.constant 0 : i32
    return %arg0, %c0_i32 : i32, i32
  }
}

</mosaic_0001>

<llo_original>
// kernel: tpu_custom_call.1
$region0: #{tpu_custom_call.1}
  #allocation0 [shape = 'u32[]', space=smem, size = 0x4, offset = 0x4, fixed_abs, tag = 'smem constant byte address 0x4 - core index']
  #allocation1 [shape = 'u32[144,128]{1,0:T(1,128)}', space=vmem, size = 0x12000, scoped, tag = 'internal scratch']
  #allocation2 [shape = 'f32[8,8,512]{2,1,0:T(8,128)}', space=vmem, size = 0x20000, scoped, tag = 'scratch operand']
  #allocation3 [shape = 'f32[8,128]{1,0:T(8,128)}', space=vmem, size = 0x1000, scoped, tag = 'scratch operand']
  #allocation4 [shape = 'f32[8,128]{1,0:T(8,128)}', space=vmem, size = 0x1000, scoped, tag = 'scratch operand']
  %s0 = inlined_call_operand.hbm [shape: f32[8,8,16], index: 0, kind: input, shape index: {}]
  %s1 = inlined_call_operand.hbm [shape: f32[16,512], index: 1, kind: input, shape index: {}]
  %s2 = inlined_call_operand.hbm [shape: f32[128,512], index: 2, kind: input, shape index: {}]
  %s3 = inlined_call_operand.vmem [shape: f32[1,512], index: 3, kind: input, shape index: {}]
  %s4 = inlined_call_operand.hbm [shape: f32[128,128], index: 4, kind: input, shape index: {}]
  %s5 = inlined_call_operand.vmem [shape: f32[1,128], index: 5, kind: input, shape index: {}]
  %s6 = inlined_call_operand.hbm [shape: f32[8,128], index: 6, kind: output, shape index: {}]
  %s7 = sld [smem:[#allocation0]]
  $region58: #{tpu_custom_call.1} parent=0
    _
  %s9 = ssub.s32 1, %s7
  %s10 = scalar_select 0, %s9, %s7
  $region1: #{tpu_custom_call.1} parent=0
    #allocation5 [shape = 'u8[32768]{0}', space=vmem, size = 0x8000, scoped, tag = 'input window, operand 0, single buffered']
    #allocation6 [shape = 's32[1]{0}', space=sflag, size = 0x4, scoped, tag = 'scoped memory for tpu_custom_call.1']
    #allocation7 [shape = 's32[1]{0}', space=sflag, size = 0x4, scoped, tag = 'scoped memory for tpu_custom_call.1']
    #allocation8 [shape = 'u8[32768]{0}', space=vmem, size = 0x8000, scoped, tag = 'input window, operand 1, single buffered']
    #allocation9 [shape = 's32[1]{0}', space=sflag, size = 0x4, scoped, tag = 'scoped memory for tpu_custom_call.1']
    #allocation10 [shape = 'u8[262144]{0}', space=vmem, size = 0x40000, scoped, tag = 'input window, operand 2, single buffered']
    #allocation11 [shape = 'u8[65536]{0}', space=vmem, size = 0x10000, scoped, tag = 'input window, operand 4, single buffered']
    #allocation12 [shape = 's32[1]{0}', space=sflag, size = 0x4, scoped, tag = 'scoped memory for tpu_custom_call.1']
    #allocation13 [shape = 'u8[4096]{0}', space=vmem, size = 0x1000, scoped, tag = 'output window, operand 0, single buffered']
    %11 = vsyncpa [#allocation6], 0
    %12 = vsyncpa [#allocation9], 0
    %13 = vsyncpa [#allocation12], 0
    %14 = vsyncpa [#allocation7], 0
    // Predicated region
    $region2: #{tpu_custom_call.1} parent=1 // pred_check
      _
    $region3: #{tpu_custom_call.1} parent=1 // pred_check_branch
      %16 = sbr.rel (0) target = $region5
    $region4: #{tpu_custom_call.1} parent=1 // pred_region
      %s18 = ssub.s32 1024, 1024
      %19 = vsyncadd [#allocation6], %s18
      %s20 = sshll.u32 [#allocation5], 4
      %s21 = int_to_ptr.vmem [resolvable:$true] %s20
      %26 = dma.hbm_to_vmem [thread:$0]  %s0, 1024, %s21, [#allocation6], 128, 128, 8
    $region5: #{tpu_custom_call.1} parent=1 // pred_fallthru
      _
    // Predicated region
    $region6: #{tpu_custom_call.1} parent=1 // pred_check
      _
    $region7: #{tpu_custom_call.1} parent=1 // pred_check_branch
      %28 = sbr.rel (0) target = $region9
    $region8: #{tpu_custom_call.1} parent=1 // pred_region
      %s30 = ssub.s32 1024, 1024
      %31 = vsyncadd [#allocation9], %s30
      %s32 = sshll.u32 [#allocation8], 4
      %s33 = int_to_ptr.vmem [resolvable:$true] %s32
      %38 = dma.hbm_to_vmem [thread:$0]  %s1, 1024, %s33, [#allocation9], 512, 512, 32
    $region9: #{tpu_custom_call.1} parent=1 // pred_fallthru
      _
    // Predicated region
    $region10: #{tpu_custom_call.1} parent=1 // pred_check
      _
    $region11: #{tpu_custom_call.1} parent=1 // pred_check_branch
      %40 = sbr.rel (0) target = $region13
    $region12: #{tpu_custom_call.1} parent=1 // pred_region
      %s42 = ssub.s32 8192, 8192
      %43 = vsyncadd [#allocation9], %s42
      %s44 = sshll.u32 [#allocation10], 4
      %s45 = int_to_ptr.vmem [resolvable:$true] %s44
      %50 = dma.hbm_to_vmem [thread:$0]  %s2, 8192, %s45, [#allocation9], 512, 512, 32
    $region13: #{tpu_custom_call.1} parent=1 // pred_fallthru
      _
    // Predicated region
    $region14: #{tpu_custom_call.1} parent=1 // pred_check
      _
    $region15: #{tpu_custom_call.1} parent=1 // pred_check_branch
      %52 = sbr.rel (0) target = $region17
    $region16: #{tpu_custom_call.1} parent=1 // pred_region
      _
    $region17: #{tpu_custom_call.1} parent=1 // pred_fallthru
      _
    // Predicated region
    $region18: #{tpu_custom_call.1} parent=1 // pred_check
      _
    $region19: #{tpu_custom_call.1} parent=1 // pred_check_branch
      %54 = sbr.rel (0) target = $region21
    $region20: #{tpu_custom_call.1} parent=1 // pred_region
      %s56 = ssub.s32 2048, 2048
      %57 = vsyncadd [#allocation12], %s56
      %s58 = sshll.u32 [#allocation11], 4
      %s59 = int_to_ptr.vmem [resolvable:$true] %s58
      %64 = dma.hbm_to_vmem [thread:$0]  %s4, 2048, %s59, [#allocation12], 128, 128, 8
    $region21: #{tpu_custom_call.1} parent=1 // pred_fallthru
      _
    // Predicated region
    $region22: #{tpu_custom_call.1} parent=1 // pred_check
      _
    $region23: #{tpu_custom_call.1} parent=1 // pred_check_branch
      %66 = sbr.rel (0) target = $region25
    $region24: #{tpu_custom_call.1} parent=1 // pred_region
      _
    $region25: #{tpu_custom_call.1} parent=1 // pred_fallthru
      _
    // Predicated region
    $region26: #{tpu_custom_call.1} parent=1 // pred_check
      _
    $region27: #{tpu_custom_call.1} parent=1 // pred_check_branch
      %68 = sbr.rel (0) target = $region29
    $region28: #{tpu_custom_call.1} parent=1 // pred_region
      %69 = dma.done [#allocation6], 1024
    $region29: #{tpu_custom_call.1} parent=1 // pred_fallthru
      _
    // Predicated region
    $region30: #{tpu_custom_call.1} parent=1 // pred_check
      _
    $region31: #{tpu_custom_call.1} parent=1 // pred_check_branch
      %71 = sbr.rel (0) target = $region33
    $region32: #{tpu_custom_call.1} parent=1 // pred_region
      %72 = dma.done [#allocation9], 1024
    $region33: #{tpu_custom_call.1} parent=1 // pred_fallthru
      _
    // Predicated region
    $region34: #{tpu_custom_call.1} parent=1 // pred_check
      _
    $region35: #{tpu_custom_call.1} parent=1 // pred_check_branch
      %74 = sbr.rel (0) target = $region37
    $region36: #{tpu_custom_call.1} parent=1 // pred_region
      %75 = dma.done [#allocation9], 8192
    $region37: #{tpu_custom_call.1} parent=1 // pred_fallthru
      _
    // Predicated region
    $region38: #{tpu_custom_call.1} parent=1 // pred_check
      _
    $region39: #{tpu_custom_call.1} parent=1 // pred_check_branch
      %77 = sbr.rel (0) target = $region41
    $region40: #{tpu_custom_call.1} parent=1 // pred_region
      %78 = dma.done [#allocation12], 2048
    $region41: #{tpu_custom_call.1} parent=1 // pred_fallthru
      _
    %p79 = scmp.eq.s32.totalorder 0, 0
    // Predicated region
    $region42: #{tpu_custom_call.1} parent=1 // pred_check
      %p80 = pneg %p79
    $region43: #{tpu_custom_call.1} parent=1 // pred_check_branch
      %82 = sbr.rel (%p80) target = $region45
    $region44: #{tpu_custom_call.1} parent=1 // pred_region
      %83 = vst [vmem:[#allocation3] sm:$0xff] 0.0
      %84 = vst [vmem:[#allocation4] sm:$0xff] 0.0
    $region45: #{tpu_custom_call.1} parent=1 // pred_fallthru
      _
    %v85 = vld [vmem:[#allocation5] sm:$0xff]
    %v86 = vld [vmem:[#allocation5 + $0x8] sm:$0xff]
    %v87 = vld [vmem:[#allocation5 + $0x10] sm:$0xff]
    %v88 = vld [vmem:[#allocation5 + $0x18] sm:$0xff]
    %v89 = vld [vmem:[#allocation5 + $0x20] sm:$0xff]
    %v90 = vld [vmem:[#allocation5 + $0x28] sm:$0xff]
    %v91 = vld [vmem:[#allocation5 + $0x30] sm:$0xff]
    %v92 = vld [vmem:[#allocation5 + $0x38] sm:$0xff]
    %v93 = vld [vmem:[#allocation8] sm:$0xff]
    %v94 = vld [vmem:[#allocation8 + $0x8] sm:$0xff]
    %v95 = vld [vmem:[#allocation8 + $0x10] sm:$0xff]
    %v96 = vld [vmem:[#allocation8 + $0x18] sm:$0xff]
    %v97 = vld [vmem:[#allocation8 + $0x20] sm:$0xff]
    %v98 = vld [vmem:[#allocation8 + $0x28] sm:$0xff]
    %v99 = vld [vmem:[#allocation8 + $0x30] sm:$0xff]
    %v100 = vld [vmem:[#allocation8 + $0x38] sm:$0xff]
    %v101 = vld [vmem:[%s3] sm:$0xf]
    %v103 = vlaneseq
    %v104 = vshrl.u32 %v103, 7
    %v105 = vsub.s32 0, %v104
    %v106 = vrot.slane %v101, %v105
    %v107 = vlaneseq
    %v108 = vshrl.u32 %v107, 7
    %v109 = vsub.s32 1, %v108
    %v110 = vrot.slane %v101, %v109
    %v111 = vlaneseq
    %v112 = vshrl.u32 %v111, 7
    %v113 = vsub.s32 2, %v112
    %v114 = vrot.slane %v101, %v113
    %v115 = vlaneseq
    %v116 = vshrl.u32 %v115, 7
    %v117 = vsub.s32 3, %v116
    %v118 = vrot.slane %v101, %v117
    %vm123 = vcmask 130048
    %v125 = vsel %vm123, %v85, 0
    %v128 = vsel %vm123, %v86, 0
    %v131 = vsel %vm123, %v87, 0
    %v134 = vsel %vm123, %v88, 0
    %v137 = vsel %vm123, %v89, 0
    %v140 = vsel %vm123, %v90, 0
    %v143 = vsel %vm123, %v91, 0
    %v146 = vsel %vm123, %v92, 0
    %148 = vmatprep.subr.mxu0 %v94
    %149 = vmatpush1.msra.mxu0 %v93
    %150 = vmatprep.subr.mxu0 %v98
    %151 = vmatpush1.msra.mxu0 %v97
    %152 = vmatprep.subr.mxu0 0.0
    %153 = vmatpush1.msra.mxu0 0.0
    %154 = vmatprep.subr.mxu0 0.0
    %155 = vmatpush1.msra.mxu0 0.0
    %156 = vmatprep.subr.mxu0 0.0
    %157 = vmatpush1.msra.mxu0 0.0
    %158 = vmatprep.subr.mxu0 0.0
    %159 = vmatpush1.msra.mxu0 0.0
    %160 = vmatprep.subr.mxu0 0.0
    %161 = vmatpush1.msra.mxu0 0.0
    %162 = vmatprep.subr.mxu0 0.0
    %163 = vmatpush1.msra.mxu0 0.0
    %164 = vmatprep.subr.mxu0 0.0
    %165 = vmatpush1.msra.mxu0 0.0
    %166 = vmatprep.subr.mxu0 0.0
    %167 = vmatpush1.msra.mxu0 0.0
    %168 = vmatprep.subr.mxu0 0.0
    %169 = vmatpush1.msra.mxu0 0.0
    %170 = vmatprep.subr.mxu0 0.0
    %171 = vmatpush1.msra.mxu0 0.0
    %172 = vmatprep.subr.mxu0 0.0
    %173 = vmatpush1.msra.mxu0 0.0
    %174 = vmatprep.subr.mxu0 0.0
    %175 = vmatpush1.msra.mxu0 0.0
    %176 = vmatprep.subr.mxu0 0.0
    %177 = vmatpush1.msra.mxu0 0.0
    %178 = vmatprep.subr.mxu0 0.0
    %179 = vmatpush1.msra.mxu0 0.0
    %180 = vmatprep.subr.mxu0 0.0
    %181 = vmatpush1.msra.mxu0 0.0
    %182 = vmatprep.subr.mxu0 0.0
    %183 = vmatpush1.msra.mxu0 0.0
    %184 = vmatprep.subr.mxu0 0.0
    %185 = vmatpush1.msra.mxu0 0.0
    %186 = vmatprep.subr.mxu0 0.0
    %187 = vmatpush1.msra.mxu0 0.0
    %188 = vmatprep.subr.mxu0 0.0
    %189 = vmatpush1.msra.mxu0 0.0
    %190 = vmatprep.subr.mxu0 0.0
    %191 = vmatpush1.msra.mxu0 0.0
    %192 = vmatprep.subr.mxu0 0.0
    %193 = vmatpush1.msra.mxu0 0.0
    %194 = vmatprep.subr.mxu0 0.0
    %195 = vmatpush1.msra.mxu0 0.0
    %196 = vmatprep.subr.mxu0 0.0
    %197 = vmatpush1.msra.mxu0 0.0
    %198 = vmatprep.subr.mxu0 0.0
    %199 = vmatpush1.msra.mxu0 0.0
    %200 = vmatprep.subr.mxu0 0.0
    %201 = vmatpush1.msra.mxu0 0.0
    %202 = vmatprep.subr.mxu0 0.0
    %203 = vmatpush1.msra.mxu0 0.0
    %204 = vmatprep.subr.mxu0 0.0
    %205 = vmatpush1.msra.mxu0 0.0
    %206 = vmatprep.subr.mxu0 0.0
    %207 = vmatpush1.msra.mxu0 0.0
    %208 = vmatprep.subr.mxu0 0.0
    %209 = vmatpush1.msra.mxu0 0.0
    %210 = vmatprep.subr.mxu0 0.0
    %211 = vmatpush1.msra.mxu0 0.0
    %212 = vmatprep.mubr.f32.mxu0 0.0
    %213 = vmatmul.mubr.f32.gmra.mrb[0].mxu0 %v125
    %v214 = vpop.f32.mrb[0].mxu0
    %v215 = vadd.f32 %v106, %v214
    %v216 = vpop.f32.mrb[0].mxu0
    %v217 = vadd.f32 %v110, %v216
    %218 = vmatprep.mubr.f32.mxu0 0.0
    %219 = vmatmul.mubr.f32.gmra.mrb[0].mxu0 %v128
    %v220 = vpop.f32.mrb[0].mxu0
    %v221 = vadd.f32 %v106, %v220
    %v222 = vpop.f32.mrb[0].mxu0
    %v223 = vadd.f32 %v110, %v222
    %224 = vmatprep.mubr.f32.mxu0 0.0
    %225 = vmatmul.mubr.f32.gmra.mrb[0].mxu0 %v131
    %v226 = vpop.f32.mrb[0].mxu0
    %v227 = vadd.f32 %v106, %v226
    %v228 = vpop.f32.mrb[0].mxu0
    %v229 = vadd.f32 %v110, %v228
    %230 = vmatprep.mubr.f32.mxu0 0.0
    %231 = vmatmul.mubr.f32.gmra.mrb[0].mxu0 %v134
    %v232 = vpop.f32.mrb[0].mxu0
    %v233 = vadd.f32 %v106, %v232
    %v234 = vpop.f32.mrb[0].mxu0
    %v235 = vadd.f32 %v110, %v234
    %236 = vmatprep.mubr.f32.mxu0 0.0
    %237 = vmatmul.mubr.f32.gmra.mrb[0].mxu0 %v137
    %v238 = vpop.f32.mrb[0].mxu0
    %v239 = vadd.f32 %v106, %v238
    %v240 = vpop.f32.mrb[0].mxu0
    %v241 = vadd.f32 %v110, %v240
    %242 = vmatprep.mubr.f32.mxu0 0.0
    %243 = vmatmul.mubr.f32.gmra.mrb[0].mxu0 %v140
    %v244 = vpop.f32.mrb[0].mxu0
    %v245 = vadd.f32 %v106, %v244
    %v246 = vpop.f32.mrb[0].mxu0
    %v247 = vadd.f32 %v110, %v246
    %248 = vmatprep.mubr.f32.mxu0 0.0
    %249 = vmatmul.mubr.f32.gmra.mrb[0].mxu0 %v143
    %v250 = vpop.f32.mrb[0].mxu0
    %v251 = vadd.f32 %v106, %v250
    %v252 = vpop.f32.mrb[0].mxu0
    %v253 = vadd.f32 %v110, %v252
    %254 = vmatprep.mubr.f32.mxu0 0.0
    %255 = vmatmul.mubr.f32.gmra.mrb[0].mxu0 %v146
    %v256 = vpop.f32.mrb[0].mxu0
    %v257 = vadd.f32 %v106, %v256
    %v258 = vpop.f32.mrb[0].mxu0
    %v259 = vadd.f32 %v110, %v258
    %260 = vdwg.mxu0
    %261 = vmatprep.subr.mxu0 %v96
    %262 = vmatpush1.msra.mxu0 %v95
    %263 = vmatprep.subr.mxu0 %v100
    %264 = vmatpush1.msra.mxu0 %v99
    %265 = vmatprep.subr.mxu0 0.0
    %266 = vmatpush1.msra.mxu0 0.0
    %267 = vmatprep.subr.mxu0 0.0
    %268 = vmatpush1.msra.mxu0 0.0
    %269 = vmatprep.subr.mxu0 0.0
    %270 = vmatpush1.msra.mxu0 0.0
    %271 = vmatprep.subr.mxu0 0.0
    %272 = vmatpush1.msra.mxu0 0.0
    %273 = vmatprep.subr.mxu0 0.0
    %274 = vmatpush1.msra.mxu0 0.0
    %275 = vmatprep.subr.mxu0 0.0
    %276 = vmatpush1.msra.mxu0 0.0
    %277 = vmatprep.subr.mxu0 0.0
    %278 = vmatpush1.msra.mxu0 0.0
    %279 = vmatprep.subr.mxu0 0.0
    %280 = vmatpush1.msra.mxu0 0.0
    %281 = vmatprep.subr.mxu0 0.0
    %282 = vmatpush1.msra.mxu0 0.0
    %283 = vmatprep.subr.mxu0 0.0
    %284 = vmatpush1.msra.mxu0 0.0
    %285 = vmatprep.subr.mxu0 0.0
    %286 = vmatpush1.msra.mxu0 0.0
    %287 = vmatprep.subr.mxu0 0.0
    %288 = vmatpush1.msra.mxu0 0.0
    %289 = vmatprep.subr.mxu0 0.0
    %290 = vmatpush1.msra.mxu0 0.0
    %291 = vmatprep.subr.mxu0 0.0
    %292 = vmatpush1.msra.mxu0 0.0
    %293 = vmatprep.subr.mxu0 0.0
    %294 = vmatpush1.msra.mxu0 0.0
    %295 = vmatprep.subr.mxu0 0.0
    %296 = vmatpush1.msra.mxu0 0.0
    %297 = vmatprep.subr.mxu0 0.0
    %298 = vmatpush1.msra.mxu0 0.0
    %299 = vmatprep.subr.mxu0 0.0
    %300 = vmatpush1.msra.mxu0 0.0
    %301 = vmatprep.subr.mxu0 0.0
    %302 = vmatpush1.msra.mxu0 0.0
    %303 = vmatprep.subr.mxu0 0.0
    %304 = vmatpush1.msra.mxu0 0.0
    %305 = vmatprep.subr.mxu0 0.0
    %306 = vmatpush1.msra.mxu0 0.0
    %307 = vmatprep.subr.mxu0 0.0
    %308 = vmatpush1.msra.mxu0 0.0
    %309 = vmatprep.subr.mxu0 0.0
    %310 = vmatpush1.msra.mxu0 0.0
    %311 = vmatprep.subr.mxu0 0.0
    %312 = vmatpush1.msra.mxu0 0.0
    %313 = vmatprep.subr.mxu0 0.0
    %314 = vmatpush1.msra.mxu0 0.0
    %315 = vmatprep.subr.mxu0 0.0
    %316 = vmatpush1.msra.mxu0 0.0
    %317 = vmatprep.subr.mxu0 0.0
    %318 = vmatpush1.msra.mxu0 0.0
    %319 = vmatprep.subr.mxu0 0.0
    %320 = vmatpush1.msra.mxu0 0.0
    %321 = vmatprep.subr.mxu0 0.0
    %322 = vmatpush1.msra.mxu0 0.0
    %323 = vmatprep.subr.mxu0 0.0
    %324 = vmatpush1.msra.mxu0 0.0
    %325 = vmatprep.mubr.f32.mxu0 0.0
    %326 = vmatmul.mubr.f32.gmra.mrb[0].mxu0 %v125
    %v327 = vpop.f32.mrb[0].mxu0
    %v328 = vadd.f32 %v114, %v327
    %v329 = vpop.f32.mrb[0].mxu0
    %v330 = vadd.f32 %v118, %v329
    %331 = vmatprep.mubr.f32.mxu0 0.0
    %332 = vmatmul.mubr.f32.gmra.mrb[0].mxu0 %v128
    %v333 = vpop.f32.mrb[0].mxu0
    %v334 = vadd.f32 %v114, %v333
    %v335 = vpop.f32.mrb[0].mxu0
    %v336 = vadd.f32 %v118, %v335
    %337 = vmatprep.mubr.f32.mxu0 0.0
    %338 = vmatmul.mubr.f32.gmra.mrb[0].mxu0 %v131
    %v339 = vpop.f32.mrb[0].mxu0
    %v340 = vadd.f32 %v114, %v339
    %v341 = vpop.f32.mrb[0].mxu0
    %v342 = vadd.f32 %v118, %v341
    %343 = vmatprep.mubr.f32.mxu0 0.0
    %344 = vmatmul.mubr.f32.gmra.mrb[0].mxu0 %v134
    %v345 = vpop.f32.mrb[0].mxu0
    %v346 = vadd.f32 %v114, %v345
    %v347 = vpop.f32.mrb[0].mxu0
    %v348 = vadd.f32 %v118, %v347
    %349 = vmatprep.mubr.f32.mxu0 0.0
    %350 = vmatmul.mubr.f32.gmra.mrb[0].mxu0 %v137
    %v351 = vpop.f32.mrb[0].mxu0
    %v352 = vadd.f32 %v114, %v351
    %v353 = vpop.f32.mrb[0].mxu0
    %v354 = vadd.f32 %v118, %v353
    %355 = vmatprep.mubr.f32.mxu0 0.0
    %356 = vmatmul.mubr.f32.gmra.mrb[0].mxu0 %v140
    %v357 = vpop.f32.mrb[0].mxu0
    %v358 = vadd.f32 %v114, %v357
    %v359 = vpop.f32.mrb[0].mxu0
    %v360 = vadd.f32 %v118, %v359
    %361 = vmatprep.mubr.f32.mxu0 0.0
    %362 = vmatmul.mubr.f32.gmra.mrb[0].mxu0 %v143
    %v363 = vpop.f32.mrb[0].mxu0
    %v364 = vadd.f32 %v114, %v363
    %v365 = vpop.f32.mrb[0].mxu0
    %v366 = vadd.f32 %v118, %v365
    %367 = vmatprep.mubr.f32.mxu0 0.0
    %368 = vmatmul.mubr.f32.gmra.mrb[0].mxu0 %v146
    %v369 = vpop.f32.mrb[0].mxu0
    %v370 = vadd.f32 %v114, %v369
    %v371 = vpop.f32.mrb[0].mxu0
    %v372 = vadd.f32 %v118, %v371
    %373 = vdwg.mxu0
    %374 = vst [vmem:[#allocation2] sm:$0xff] %v215
    %375 = vst [vmem:[#allocation2 + $0x8] sm:$0xff] %v217
    %376 = vst [vmem:[#allocation2 + $0x10] sm:$0xff] %v328
    %377 = vst [vmem:[#allocation2 + $0x18] sm:$0xff] %v330
    %378 = vst [vmem:[#allocation2 + $0x20] sm:$0xff] %v221
    %379 = vst [vmem:[#allocation2 + $0x28] sm:$0xff] %v223
    %380 = vst [vmem:[#allocation2 + $0x30] sm:$0xff] %v334
    %381 = vst [vmem:[#allocation2 + $0x38] sm:$0xff] %v336
    %382 = vst [vmem:[#allocation2 + $0x40] sm:$0xff] %v227
    %383 = vst [vmem:[#allocation2 + $0x48] sm:$0xff] %v229
    %384 = vst [vmem:[#allocation2 + $0x50] sm:$0xff] %v340
    %385 = vst [vmem:[#allocation2 + $0x58] sm:$0xff] %v342
    %386 = vst [vmem:[#allocation2 + $0x60] sm:$0xff] %v233
    %387 = vst [vmem:[#allocation2 + $0x68] sm:$0xff] %v235
    %388 = vst [vmem:[#allocation2 + $0x70] sm:$0xff] %v346
    %389 = vst [vmem:[#allocation2 + $0x78] sm:$0xff] %v348
    %390 = vst [vmem:[#allocation2 + $0x80] sm:$0xff] %v239
    %391 = vst [vmem:[#allocation2 + $0x88] sm:$0xff] %v241
    %392 = vst [vmem:[#allocation2 + $0x90] sm:$0xff] %v352
    %393 = vst [vmem:[#allocation2 + $0x98] sm:$0xff] %v354
    %394 = vst [vmem:[#allocation2 + $0xa0] sm:$0xff] %v245
    %395 = vst [vmem:[#allocation2 + $0xa8] sm:$0xff] %v247
    %396 = vst [vmem:[#allocation2 + $0xb0] sm:$0xff] %v358
    %397 = vst [vmem:[#allocation2 + $0xb8] sm:$0xff] %v360
    %398 = vst [vmem:[#allocation2 + $0xc0] sm:$0xff] %v251
    %399 = vst [vmem:[#allocation2 + $0xc8] sm:$0xff] %v253
    %400 = vst [vmem:[#allocation2 + $0xd0] sm:$0xff] %v364
    %401 = vst [vmem:[#allocation2 + $0xd8] sm:$0xff] %v366
    %402 = vst [vmem:[#allocation2 + $0xe0] sm:$0xff] %v257
    %403 = vst [vmem:[#allocation2 + $0xe8] sm:$0xff] %v259
    %404 = vst [vmem:[#allocation2 + $0xf0] sm:$0xff] %v370
    %405 = vst [vmem:[#allocation2 + $0xf8] sm:$0xff] %v372
    %v406 = vld [vmem:[#allocation3] sm:$0xff]
    %v407 = vld [vmem:[#allocation4] sm:$0xff]
    %v408 = vld [vmem:[#allocation2] sm:$0xff]
    %v409 = vld [vmem:[#allocation2 + $0x8] sm:$0xff]
    %v410 = vld [vmem:[#allocation2 + $0x10] sm:$0xff]
    %v411 = vld [vmem:[#allocation2 + $0x18] sm:$0xff]
    %v412 = vld [vmem:[#allocation10] sm:$0xff]
    %v413 = vld [vmem:[#allocation10 + $0x8] sm:$0xff]
    %v414 = vld [vmem:[#allocation10 + $0x10] sm:$0xff]
    %v415 = vld [vmem:[#allocation10 + $0x18] sm:$0xff]
    %v416 = vld [vmem:[#allocation10 + $0x20] sm:$0xff]
    %v417 = vld [vmem:[#allocation10 + $0x28] sm:$0xff]
    %v418 = vld [vmem:[#allocation10 + $0x30] sm:$0xff]
    %v419 = vld [vmem:[#allocation10 + $0x38] sm:$0xff]
    %v420 = vld [vmem:[#allocation10 + $0x40] sm:$0xff]
    %v421 = vld [vmem:[#allocation10 + $0x48] sm:$0xff]
    %v422 = vld [vmem:[#allocation10 + $0x50] sm:$0xff]
    %v423 = vld [vmem:[#allocation10 + $0x58] sm:$0xff]
    %v424 = vld [vmem:[#allocation10 + $0x60] sm:$0xff]
    %v425 = vld [vmem:[#allocation10 + $0x68] sm:$0xff]
    %v426 = vld [vmem:[#allocation10 + $0x70] sm:$0xff]
    %v427 = vld [vmem:[#allocation10 + $0x78] sm:$0xff]
    %v428 = vld [vmem:[#allocation10 + $0x80] sm:$0xff]
    %v429 = vld [vmem:[#allocation10 + $0x88] sm:$0xff]
    %v430 = vld [vmem:[#allocation10 + $0x90] sm:$0xff]
    %v431 = vld [vmem:[#allocation10 + $0x98] sm:$0xff]
    %v432 = vld [vmem:[#allocation10 + $0xa0] sm:$0xff]
    %v433 = vld [vmem:[#allocation10 + $0xa8] sm:$0xff]
    %v434 = vld [vmem:[#allocation10 + $0xb0] sm:$0xff]
    %v435 = vld [vmem:[#allocation10 + $0xb8] sm:$0xff]
    %v436 = vld [vmem:[#allocation10 + $0xc0] sm:$0xff]
    %v437 = vld [vmem:[#allocation10 + $0xc8] sm:$0xff]
    %v438 = vld [vmem:[#allocation10 + $0xd0] sm:$0xff]
    %v439 = vld [vmem:[#allocation10 + $0xd8] sm:$0xff]
    %v440 = vld [vmem:[#allocation10 + $0xe0] sm:$0xff]
    %v441 = vld [vmem:[#allocation10 + $0xe8] sm:$0xff]
    %v442 = vld [vmem:[#allocation10 + $0xf0] sm:$0xff]
    %v443 = vld [vmem:[#allocation10 + $0xf8] sm:$0xff]
    %v444 = vld [vmem:[#allocation10 + $0x100] sm:$0xff]
    %v445 = vld [vmem:[#allocation10 + $0x108] sm:$0xff]
    %v446 = vld [vmem:[#allocation10 + $0x110] sm:$0xff]
    %v447 = vld [vmem:[#allocation10 + $0x118] sm:$0xff]
    %v448 = vld [vmem:[#allocation10 + $0x120] sm:$0xff]
    %v449 = vld [vmem:[#allocation10 + $0x128] sm:$0xff]
    %v450 = vld [vmem:[#allocation10 + $0x130] sm:$0xff]
    %v451 = vld [vmem:[#allocation10 + $0x138] sm:$0xff]
    %v452 = vld [vmem:[#allocation10 + $0x140] sm:$0xff]
    %v453 = vld [vmem:[#allocation10 + $0x148] sm:$0xff]
    %v454 = vld [vmem:[#allocation10 + $0x150] sm:$0xff]
    %v455 = vld [vmem:[#allocation10 + $0x158] sm:$0xff]
    %v456 = vld [vmem:[#allocation10 + $0x160] sm:$0xff]
    %v457 = vld [vmem:[#allocation10 + $0x168] sm:$0xff]
    %v458 = vld [vmem:[#allocation10 + $0x170] sm:$0xff]
    %v459 = vld [vmem:[#allocation10 + $0x178] sm:$0xff]
    %v460 = vld [vmem:[#allocation10 + $0x180] sm:$0xff]
    %v461 = vld [vmem:[#allocation10 + $0x188] sm:$0xff]
    %v462 = vld [vmem:[#allocation10 + $0x190] sm:$0xff]
    %v463 = vld [vmem:[#allocation10 + $0x198] sm:$0xff]
    %v464 = vld [vmem:[#allocation10 + $0x1a0] sm:$0xff]
    %v465 = vld [vmem:[#allocation10 + $0x1a8] sm:$0xff]
    %v466 = vld [vmem:[#allocation10 + $0x1b0] sm:$0xff]
    %v467 = vld [vmem:[#allocation10 + $0x1b8] sm:$0xff]
    %v468 = vld [vmem:[#allocation10 + $0x1c0] sm:$0xff]
    %v469 = vld [vmem:[#allocation10 + $0x1c8] sm:$0xff]
    %v470 = vld [vmem:[#allocation10 + $0x1d0] sm:$0xff]
    %v471 = vld [vmem:[#allocation10 + $0x1d8] sm:$0xff]
    %v472 = vld [vmem:[#allocation10 + $0x1e0] sm:$0xff]
    %v473 = vld [vmem:[#allocation10 + $0x1e8] sm:$0xff]
    %v474 = vld [vmem:[#allocation10 + $0x1f0] sm:$0xff]
    %v475 = vld [vmem:[#allocation10 + $0x1f8] sm:$0xff]
    %476 = vmatprep.subr.mxu0 %v413
    %477 = vmatpush1.msra.mxu0 %v412
    %478 = vmatprep.subr.mxu0 %v417
    %479 = vmatpush1.msra.mxu0 %v416
    %480 = vmatprep.subr.mxu0 %v421
    %481 = vmatpush1.msra.mxu0 %v420
    %482 = vmatprep.subr.mxu0 %v425
    %483 = vmatpush1.msra.mxu0 %v424
    %484 = vmatprep.subr.mxu0 %v429
    %485 = vmatpush1.msra.mxu0 %v428
    %486 = vmatprep.subr.mxu0 %v433
    %487 = vmatpush1.msra.mxu0 %v432
    %488 = vmatprep.subr.mxu0 %v437
    %489 = vmatpush1.msra.mxu0 %v436
    %490 = vmatprep.subr.mxu0 %v441
    %491 = vmatpush1.msra.mxu0 %v440
    %492 = vmatprep.subr.mxu0 %v445
    %493 = vmatpush1.msra.mxu0 %v444
    %494 = vmatprep.subr.mxu0 %v449
    %495 = vmatpush1.msra.mxu0 %v448
    %496 = vmatprep.subr.mxu0 %v453
    %497 = vmatpush1.msra.mxu0 %v452
    %498 = vmatprep.subr.mxu0 %v457
    %499 = vmatpush1.msra.mxu0 %v456
    %500 = vmatprep.subr.mxu0 %v461
    %501 = vmatpush1.msra.mxu0 %v460
    %502 = vmatprep.subr.mxu0 %v465
    %503 = vmatpush1.msra.mxu0 %v464
    %504 = vmatprep.subr.mxu0 %v469
    %505 = vmatpush1.msra.mxu0 %v468
    %506 = vmatprep.subr.mxu0 %v473
    %507 = vmatpush1.msra.mxu0 %v472
    %508 = vmatprep.subr.mxu0 0.0
    %509 = vmatpush1.msra.mxu0 0.0
    %510 = vmatprep.subr.mxu0 0.0
    %511 = vmatpush1.msra.mxu0 0.0
    %512 = vmatprep.subr.mxu0 0.0
    %513 = vmatpush1.msra.mxu0 0.0
    %514 = vmatprep.subr.mxu0 0.0
    %515 = vmatpush1.msra.mxu0 0.0
    %516 = vmatprep.subr.mxu0 0.0
    %517 = vmatpush1.msra.mxu0 0.0
    %518 = vmatprep.subr.mxu0 0.0
    %519 = vmatpush1.msra.mxu0 0.0
    %520 = vmatprep.subr.mxu0 0.0
    %521 = vmatpush1.msra.mxu0 0.0
    %522 = vmatprep.subr.mxu0 0.0
    %523 = vmatpush1.msra.mxu0 0.0
    %524 = vmatprep.subr.mxu0 0.0
    %525 = vmatpush1.msra.mxu0 0.0
    %526 = vmatprep.subr.mxu0 0.0
    %527 = vmatpush1.msra.mxu0 0.0
    %528 = vmatprep.subr.mxu0 0.0
    %529 = vmatpush1.msra.mxu0 0.0
    %530 = vmatprep.subr.mxu0 0.0
    %531 = vmatpush1.msra.mxu0 0.0
    %532 = vmatprep.subr.mxu0 0.0
    %533 = vmatpush1.msra.mxu0 0.0
    %534 = vmatprep.subr.mxu0 0.0
    %535 = vmatpush1.msra.mxu0 0.0
    %536 = vmatprep.subr.mxu0 0.0
    %537 = vmatpush1.msra.mxu0 0.0
    %538 = vmatprep.subr.mxu0 0.0
    %539 = vmatpush1.msra.mxu0 0.0
    %540 = vmatprep.mubr.f32.mxu0 0.0
    %541 = vmatmul.mubr.f32.gmra.mrb[0].mxu0 %v406
    %v542 = vpop.f32.mrb[0].mxu0
    %v543 = vadd.f32 0.0, %v542
    %v544 = vpop.f32.mrb[0].mxu0
    %v545 = vadd.f32 0.0, %v544
    %546 = vdwg.mxu0
    %547 = vmatprep.subr.mxu0 %v415
    %548 = vmatpush1.msra.mxu0 %v414
    %549 = vmatprep.subr.mxu0 %v419
    %550 = vmatpush1.msra.mxu0 %v418
    %551 = vmatprep.subr.mxu0 %v423
    %552 = vmatpush1.msra.mxu0 %v422
    %553 = vmatprep.subr.mxu0 %v427
    %554 = vmatpush1.msra.mxu0 %v426
    %555 = vmatprep.subr.mxu0 %v431
    %556 = vmatpush1.msra.mxu0 %v430
    %557 = vmatprep.subr.mxu0 %v435
    %558 = vmatpush1.msra.mxu0 %v434
    %559 = vmatprep.subr.mxu0 %v439
    %560 = vmatpush1.msra.mxu0 %v438
    %561 = vmatprep.subr.mxu0 %v443
    %562 = vmatpush1.msra.mxu0 %v442
    %563 = vmatprep.subr.mxu0 %v447
    %564 = vmatpush1.msra.mxu0 %v446
    %565 = vmatprep.subr.mxu0 %v451
    %566 = vmatpush1.msra.mxu0 %v450
    %567 = vmatprep.subr.mxu0 %v455
    %568 = vmatpush1.msra.mxu0 %v454
    %569 = vmatprep.subr.mxu0 %v459
    %570 = vmatpush1.msra.mxu0 %v458
    %571 = vmatprep.subr.mxu0 %v463
    %572 = vmatpush1.msra.mxu0 %v462
    %573 = vmatprep.subr.mxu0 %v467
    %574 = vmatpush1.msra.mxu0 %v466
    %575 = vmatprep.subr.mxu0 %v471
    %576 = vmatpush1.msra.mxu0 %v470
    %577 = vmatprep.subr.mxu0 %v475
    %578 = vmatpush1.msra.mxu0 %v474
    %579 = vmatprep.subr.mxu0 0.0
    %580 = vmatpush1.msra.mxu0 0.0
    %581 = vmatprep.subr.mxu0 0.0
    %582 = vmatpush1.msra.mxu0 0.0
    %583 = vmatprep.subr.mxu0 0.0
    %584 = vmatpush1.msra.mxu0 0.0
    %585 = vmatprep.subr.mxu0 0.0
    %586 = vmatpush1.msra.mxu0 0.0
    %587 = vmatprep.subr.mxu0 0.0
    %588 = vmatpush1.msra.mxu0 0.0
    %589 = vmatprep.subr.mxu0 0.0
    %590 = vmatpush1.msra.mxu0 0.0
    %591 = vmatprep.subr.mxu0 0.0
    %592 = vmatpush1.msra.mxu0 0.0
    %593 = vmatprep.subr.mxu0 0.0
    %594 = vmatpush1.msra.mxu0 0.0
    %595 = vmatprep.subr.mxu0 0.0
    %596 = vmatpush1.msra.mxu0 0.0
    %597 = vmatprep.subr.mxu0 0.0
    %598 = vmatpush1.msra.mxu0 0.0
    %599 = vmatprep.subr.mxu0 0.0
    %600 = vmatpush1.msra.mxu0 0.0
    %601 = vmatprep.subr.mxu0 0.0
    %602 = vmatpush1.msra.mxu0 0.0
    %603 = vmatprep.subr.mxu0 0.0
    %604 = vmatpush1.msra.mxu0 0.0
    %605 = vmatprep.subr.mxu0 0.0
    %606 = vmatpush1.msra.mxu0 0.0
    %607 = vmatprep.subr.mxu0 0.0
    %608 = vmatpush1.msra.mxu0 0.0
    %609 = vmatprep.subr.mxu0 0.0
    %610 = vmatpush1.msra.mxu0 0.0
    %611 = vmatprep.mubr.f32.mxu0 0.0
    %612 = vmatmul.mubr.f32.gmra.mrb[0].mxu0 %v406
    %v613 = vpop.f32.mrb[0].mxu0
    %v614 = vadd.f32 0.0, %v613
    %v615 = vpop.f32.mrb[0].mxu0
    %v616 = vadd.f32 0.0, %v615
    %617 = vdwg.mxu0
    %v618 = vadd.f32 %v408, %v543
    %v619 = vadd.f32 %v409, %v545
    %v620 = vadd.f32 %v410, %v614
    %v621 = vadd.f32 %v411, %v616
    %v622 = vmul.f32 %v618, 0.5
    %v623 = vtanh.pop %v622
    %v624 = vmul.f32 %v623, 0.5
    %v625 = vadd.f32 %v624, 0.5
    %v626 = vmul.f32 %v619, 0.5
    %v627 = vtanh.pop %v626
    %v628 = vmul.f32 %v627, 0.5
    %v629 = vadd.f32 %v628, 0.5
    %v630 = vtanh.pop %v620
    %v631 = vmul.f32 %v621, 0.5
    %v632 = vtanh.pop %v631
    %v633 = vmul.f32 %v632, 0.5
    %v634 = vadd.f32 %v633, 0.5
    %v635 = vmul.f32 %v629, %v407
    %v636 = vmul.f32 %v625, %v630
    %v637 = vadd.f32 %v635, %v636
    %v638 = vtanh.pop %v637
    %v639 = vmul.f32 %v634, %v638
    %s640 = scalar_lea.vmem [#allocation2], 32
    %v641 = vld [vmem:[%s640] sm:$0xff]
    %v642 = vld [vmem:[%s640 + $0x8] sm:$0xff]
    %v643 = vld [vmem:[%s640 + $0x10] sm:$0xff]
    %v644 = vld [vmem:[%s640 + $0x18] sm:$0xff]
    %645 = vmatprep.subr.mxu0 %v413
    %646 = vmatpush1.msra.mxu0 %v412
    %647 = vmatprep.subr.mxu0 %v417
    %648 = vmatpush1.msra.mxu0 %v416
    %649 = vmatprep.subr.mxu0 %v421
    %650 = vmatpush1.msra.mxu0 %v420
    %651 = vmatprep.subr.mxu0 %v425
    %652 = vmatpush1.msra.mxu0 %v424
    %653 = vmatprep.subr.mxu0 %v429
    %654 = vmatpush1.msra.mxu0 %v428
    %655 = vmatprep.subr.mxu0 %v433
    %656 = vmatpush1.msra.mxu0 %v432
    %657 = vmatprep.subr.mxu0 %v437
    %658 = vmatpush1.msra.mxu0 %v436
    %659 = vmatprep.subr.mxu0 %v441
    %660 = vmatpush1.msra.mxu0 %v440
    %661 = vmatprep.subr.mxu0 %v445
    %662 = vmatpush1.msra.mxu0 %v444
    %663 = vmatprep.subr.mxu0 %v449
    %664 = vmatpush1.msra.mxu0 %v448
    %665 = vmatprep.subr.mxu0 %v453
    %666 = vmatpush1.msra.mxu0 %v452
    %667 = vmatprep.subr.mxu0 %v457
    %668 = vmatpush1.msra.mxu0 %v456
    %669 = vmatprep.subr.mxu0 %v461
    %670 = vmatpush1.msra.mxu0 %v460
    %671 = vmatprep.subr.mxu0 %v465
    %672 = vmatpush1.msra.mxu0 %v464
    %673 = vmatprep.subr.mxu0 %v469
    %674 = vmatpush1.msra.mxu0 %v468
    %675 = vmatprep.subr.mxu0 %v473
    %676 = vmatpush1.msra.mxu0 %v472
    %677 = vmatprep.subr.mxu0 0.0
    %678 = vmatpush1.msra.mxu0 0.0
    %679 = vmatprep.subr.mxu0 0.0
    %680 = vmatpush1.msra.mxu0 0.0
    %681 = vmatprep.subr.mxu0 0.0
    %682 = vmatpush1.msra.mxu0 0.0
    %683 = vmatprep.subr.mxu0 0.0
    %684 = vmatpush1.msra.mxu0 0.0
    %685 = vmatprep.subr.mxu0 0.0
    %686 = vmatpush1.msra.mxu0 0.0
    %687 = vmatprep.subr.mxu0 0.0
    %688 = vmatpush1.msra.mxu0 0.0
    %689 = vmatprep.subr.mxu0 0.0
    %690 = vmatpush1.msra.mxu0 0.0
    %691 = vmatprep.subr.mxu0 0.0
    %692 = vmatpush1.msra.mxu0 0.0
    %693 = vmatprep.subr.mxu0 0.0
    %694 = vmatpush1.msra.mxu0 0.0
    %695 = vmatprep.subr.mxu0 0.0
    %696 = vmatpush1.msra.mxu0 0.0
    %697 = vmatprep.subr.mxu0 0.0
    %698 = vmatpush1.msra.mxu0 0.0
    %699 = vmatprep.subr.mxu0 0.0
    %700 = vmatpush1.msra.mxu0 0.0
    %701 = vmatprep.subr.mxu0 0.0
    %702 = vmatpush1.msra.mxu0 0.0
    %703 = vmatprep.subr.mxu0 0.0
    %704 = vmatpush1.msra.mxu0 0.0
    %705 = vmatprep.subr.mxu0 0.0
    %706 = vmatpush1.msra.mxu0 0.0
    %707 = vmatprep.subr.mxu0 0.0
    %708 = vmatpush1.msra.mxu0 0.0
    %709 = vmatprep.mubr.f32.mxu0 0.0
    %710 = vmatmul.mubr.f32.gmra.mrb[0].mxu0 %v639
    %v711 = vpop.f32.mrb[0].mxu0
    %v712 = vadd.f32 0.0, %v711
    %v713 = vpop.f32.mrb[0].mxu0
    %v714 = vadd.f32 0.0, %v713
    %715 = vdwg.mxu0
    %716 = vmatprep.subr.mxu0 %v415
    %717 = vmatpush1.msra.mxu0 %v414
    %718 = vmatprep.subr.mxu0 %v419
    %719 = vmatpush1.msra.mxu0 %v418
    %720 = vmatprep.subr.mxu0 %v423
    %721 = vmatpush1.msra.mxu0 %v422
    %722 = vmatprep.subr.mxu0 %v427
    %723 = vmatpush1.msra.mxu0 %v426
    %724 = vmatprep.subr.mxu0 %v431
    %725 = vmatpush1.msra.mxu0 %v430
    %726 = vmatprep.subr.mxu0 %v435
    %727 = vmatpush1.msra.mxu0 %v434
    %728 = vmatprep.subr.mxu0 %v439
    %729 = vmatpush1.msra.mxu0 %v438
    %730 = vmatprep.subr.mxu0 %v443
    %731 = vmatpush1.msra.mxu0 %v442
    %732 = vmatprep.subr.mxu0 %v447
    %733 = vmatpush1.msra.mxu0 %v446
    %734 = vmatprep.subr.mxu0 %v451
    %735 = vmatpush1.msra.mxu0 %v450
    %736 = vmatprep.subr.mxu0 %v455
    %737 = vmatpush1.msra.mxu0 %v454
    %738 = vmatprep.subr.mxu0 %v459
    %739 = vmatpush1.msra.mxu0 %v458
    %740 = vmatprep.subr.mxu0 %v463
    %741 = vmatpush1.msra.mxu0 %v462
    %742 = vmatprep.subr.mxu0 %v467
    %743 = vmatpush1.msra.mxu0 %v466
    %744 = vmatprep.subr.mxu0 %v471
    %745 = vmatpush1.msra.mxu0 %v470
    %746 = vmatprep.subr.mxu0 %v475
    %747 = vmatpush1.msra.mxu0 %v474
    %748 = vmatprep.subr.mxu0 0.0
    %749 = vmatpush1.msra.mxu0 0.0
    %750 = vmatprep.subr.mxu0 0.0
    %751 = vmatpush1.msra.mxu0 0.0
    %752 = vmatprep.subr.mxu0 0.0
    %753 = vmatpush1.msra.mxu0 0.0
    %754 = vmatprep.subr.mxu0 0.0
    %755 = vmatpush1.msra.mxu0 0.0
    %756 = vmatprep.subr.mxu0 0.0
    %757 = vmatpush1.msra.mxu0 0.0
    %758 = vmatprep.subr.mxu0 0.0
    %759 = vmatpush1.msra.mxu0 0.0
    %760 = vmatprep.subr.mxu0 0.0
    %761 = vmatpush1.msra.mxu0 0.0
    %762 = vmatprep.subr.mxu0 0.0
    %763 = vmatpush1.msra.mxu0 0.0
    %764 = vmatprep.subr.mxu0 0.0
    %765 = vmatpush1.msra.mxu0 0.0
    %766 = vmatprep.subr.mxu0 0.0
    %767 = vmatpush1.msra.mxu0 0.0
    %768 = vmatprep.subr.mxu0 0.0
    %769 = vmatpush1.msra.mxu0 0.0
    %770 = vmatprep.subr.mxu0 0.0
    %771 = vmatpush1.msra.mxu0 0.0
    %772 = vmatprep.subr.mxu0 0.0
    %773 = vmatpush1.msra.mxu0 0.0
    %774 = vmatprep.subr.mxu0 0.0
    %775 = vmatpush1.msra.mxu0 0.0
    %776 = vmatprep.subr.mxu0 0.0
    %777 = vmatpush1.msra.mxu0 0.0
    %778 = vmatprep.subr.mxu0 0.0
    %779 = vmatpush1.msra.mxu0 0.0
    %780 = vmatprep.mubr.f32.mxu0 0.0
    %781 = vmatmul.mubr.f32.gmra.mrb[0].mxu0 %v639
    %v782 = vpop.f32.mrb[0].mxu0
    %v783 = vadd.f32 0.0, %v782
    %v784 = vpop.f32.mrb[0].mxu0
    %v785 = vadd.f32 0.0, %v784
    %786 = vdwg.mxu0
    %v787 = vadd.f32 %v641, %v712
    %v788 = vadd.f32 %v642, %v714
    %v789 = vadd.f32 %v643, %v783
    %v790 = vadd.f32 %v644, %v785
    %v791 = vmul.f32 %v787, 0.5
    %v792 = vtanh.pop %v791
    %v793 = vmul.f32 %v792, 0.5
    %v794 = vadd.f32 %v793, 0.5
    %v795 = vmul.f32 %v788, 0.5
    %v796 = vtanh.pop %v795
    %v797 = vmul.f32 %v796, 0.5
    %v798 = vadd.f32 %v797, 0.5
    %v799 = vtanh.pop %v789
    %v800 = vmul.f32 %v790, 0.5
    %v801 = vtanh.pop %v800
    %v802 = vmul.f32 %v801, 0.5
    %v803 = vadd.f32 %v802, 0.5
    %v804 = vmul.f32 %v798, %v637
    %v805 = vmul.f32 %v794, %v799
    %v806 = vadd.f32 %v804, %v805
    %v807 = vtanh.pop %v806
    %v808 = vmul.f32 %v803, %v807
    %s809 = scalar_lea.vmem [#allocation2], 64
    %v810 = vld [vmem:[%s809] sm:$0xff]
    %v811 = vld [vmem:[%s809 + $0x8] sm:$0xff]
    %v812 = vld [vmem:[%s809 + $0x10] sm:$0xff]
    %v813 = vld [vmem:[%s809 + $0x18] sm:$0xff]
    %814 = vmatprep.subr.mxu0 %v413
    %815 = vmatpush1.msra.mxu0 %v412
    %816 = vmatprep.subr.mxu0 %v417
    %817 = vmatpush1.msra.mxu0 %v416
    %818 = vmatprep.subr.mxu0 %v421
    %819 = vmatpush1.msra.mxu0 %v420
    %820 = vmatprep.subr.mxu0 %v425
    %821 = vmatpush1.msra.mxu0 %v424
    %822 = vmatprep.subr.mxu0 %v429
    %823 = vmatpush1.msra.mxu0 %v428
    %824 = vmatprep.subr.mxu0 %v433
    %825 = vmatpush1.msra.mxu0 %v432
    %826 = vmatprep.subr.mxu0 %v437
    %827 = vmatpush1.msra.mxu0 %v436
    %828 = vmatprep.subr.mxu0 %v441
    %829 = vmatpush1.msra.mxu0 %v440
    %830 = vmatprep.subr.mxu0 %v445
    %831 = vmatpush1.msra.mxu0 %v444
    %832 = vmatprep.subr.mxu0 %v449
    %833 = vmatpush1.msra.mxu0 %v448
    %834 = vmatprep.subr.mxu0 %v453
    %835 = vmatpush1.msra.mxu0 %v452
    %836 = vmatprep.subr.mxu0 %v457
    %837 = vmatpush1.msra.mxu0 %v456
    %838 = vmatprep.subr.mxu0 %v461
    %839 = vmatpush1.msra.mxu0 %v460
    %840 = vmatprep.subr.mxu0 %v465
    %841 = vmatpush1.msra.mxu0 %v464
    %842 = vmatprep.subr.mxu0 %v469
    %843 = vmatpush1.msra.mxu0 %v468
    %844 = vmatprep.subr.mxu0 %v473
    %845 = vmatpush1.msra.mxu0 %v472
    %846 = vmatprep.subr.mxu0 0.0
    %847 = vmatpush1.msra.mxu0 0.0
    %848 = vmatprep.subr.mxu0 0.0
    %849 = vmatpush1.msra.mxu0 0.0
    %850 = vmatprep.subr.mxu0 0.0
    %851 = vmatpush1.msra.mxu0 0.0
    %852 = vmatprep.subr.mxu0 0.0
    %853 = vmatpush1.msra.mxu0 0.0
    %854 = vmatprep.subr.mxu0 0.0
    %855 = vmatpush1.msra.mxu0 0.0
    %856 = vmatprep.subr.mxu0 0.0
    %857 = vmatpush1.msra.mxu0 0.0
    %858 = vmatprep.subr.mxu0 0.0
    %859 = vmatpush1.msra.mxu0 0.0
    %860 = vmatprep.subr.mxu0 0.0
    %861 = vmatpush1.msra.mxu0 0.0
    %862 = vmatprep.subr.mxu0 0.0
    %863 = vmatpush1.msra.mxu0 0.0
    %864 = vmatprep.subr.mxu0 0.0
    %865 = vmatpush1.msra.mxu0 0.0
    %866 = vmatprep.subr.mxu0 0.0
    %867 = vmatpush1.msra.mxu0 0.0
    %868 = vmatprep.subr.mxu0 0.0
    %869 = vmatpush1.msra.mxu0 0.0
    %870 = vmatprep.subr.mxu0 0.0
    %871 = vmatpush1.msra.mxu0 0.0
    %872 = vmatprep.subr.mxu0 0.0
    %873 = vmatpush1.msra.mxu0 0.0
    %874 = vmatprep.subr.mxu0 0.0
    %875 = vmatpush1.msra.mxu0 0.0
    %876 = vmatprep.subr.mxu0 0.0
    %877 = vmatpush1.msra.mxu0 0.0
    %878 = vmatprep.mubr.f32.mxu0 0.0
    %879 = vmatmul.mubr.f32.gmra.mrb[0].mxu0 %v808
    %v880 = vpop.f32.mrb[0].mxu0
    %v881 = vadd.f32 0.0, %v880
    %v882 = vpop.f32.mrb[0].mxu0
    %v883 = vadd.f32 0.0, %v882
    %884 = vdwg.mxu0
    %885 = vmatprep.subr.mxu0 %v415
    %886 = vmatpush1.msra.mxu0 %v414
    %887 = vmatprep.subr.mxu0 %v419
    %888 = vmatpush1.msra.mxu0 %v418
    %889 = vmatprep.subr.mxu0 %v423
    %890 = vmatpush1.msra.mxu0 %v422
    %891 = vmatprep.subr.mxu0 %v427
    %892 = vmatpush1.msra.mxu0 %v426
    %893 = vmatprep.subr.mxu0 %v431
    %894 = vmatpush1.msra.mxu0 %v430
    %895 = vmatprep.subr.mxu0 %v435
    %896 = vmatpush1.msra.mxu0 %v434
    %897 = vmatprep.subr.mxu0 %v439
    %898 = vmatpush1.msra.mxu0 %v438
    %899 = vmatprep.subr.mxu0 %v443
    %900 = vmatpush1.msra.mxu0 %v442
    %901 = vmatprep.subr.mxu0 %v447
    %902 = vmatpush1.msra.mxu0 %v446
    %903 = vmatprep.subr.mxu0 %v451
    %904 = vmatpush1.msra.mxu0 %v450
    %905 = vmatprep.subr.mxu0 %v455
    %906 = vmatpush1.msra.mxu0 %v454
    %907 = vmatprep.subr.mxu0 %v459
    %908 = vmatpush1.msra.mxu0 %v458
    %909 = vmatprep.subr.mxu0 %v463
    %910 = vmatpush1.msra.mxu0 %v462
    %911 = vmatprep.subr.mxu0 %v467
    %912 = vmatpush1.msra.mxu0 %v466
    %913 = vmatprep.subr.mxu0 %v471
    %914 = vmatpush1.msra.mxu0 %v470
    %915 = vmatprep.subr.mxu0 %v475
    %916 = vmatpush1.msra.mxu0 %v474
    %917 = vmatprep.subr.mxu0 0.0
    %918 = vmatpush1.msra.mxu0 0.0
    %919 = vmatprep.subr.mxu0 0.0
    %920 = vmatpush1.msra.mxu0 0.0
    %921 = vmatprep.subr.mxu0 0.0
    %922 = vmatpush1.msra.mxu0 0.0
    %923 = vmatprep.subr.mxu0 0.0
    %924 = vmatpush1.msra.mxu0 0.0
    %925 = vmatprep.subr.mxu0 0.0
    %926 = vmatpush1.msra.mxu0 0.0
    %927 = vmatprep.subr.mxu0 0.0
    %928 = vmatpush1.msra.mxu0 0.0
    %929 = vmatprep.subr.mxu0 0.0
    %930 = vmatpush1.msra.mxu0 0.0
    %931 = vmatprep.subr.mxu0 0.0
    %932 = vmatpush1.msra.mxu0 0.0
    %933 = vmatprep.subr.mxu0 0.0
    %934 = vmatpush1.msra.mxu0 0.0
    %935 = vmatprep.subr.mxu0 0.0
    %936 = vmatpush1.msra.mxu0 0.0
    %937 = vmatprep.subr.mxu0 0.0
    %938 = vmatpush1.msra.mxu0 0.0
    %939 = vmatprep.subr.mxu0 0.0
    %940 = vmatpush1.msra.mxu0 0.0
    %941 = vmatprep.subr.mxu0 0.0
    %942 = vmatpush1.msra.mxu0 0.0
    %943 = vmatprep.subr.mxu0 0.0
    %944 = vmatpush1.msra.mxu0 0.0
    %945 = vmatprep.subr.mxu0 0.0
    %946 = vmatpush1.msra.mxu0 0.0
    %947 = vmatprep.subr.mxu0 0.0
    %948 = vmatpush1.msra.mxu0 0.0
    %949 = vmatprep.mubr.f32.mxu0 0.0
    %950 = vmatmul.mubr.f32.gmra.mrb[0].mxu0 %v808
    %v951 = vpop.f32.mrb[0].mxu0
    %v952 = vadd.f32 0.0, %v951
    %v953 = vpop.f32.mrb[0].mxu0
    %v954 = vadd.f32 0.0, %v953
    %955 = vdwg.mxu0
    %v956 = vadd.f32 %v810, %v881
    %v957 = vadd.f32 %v811, %v883
    %v958 = vadd.f32 %v812, %v952
    %v959 = vadd.f32 %v813, %v954
    %v960 = vmul.f32 %v956, 0.5
    %v961 = vtanh.pop %v960
    %v962 = vmul.f32 %v961, 0.5
    %v963 = vadd.f32 %v962, 0.5
    %v964 = vmul.f32 %v957, 0.5
    %v965 = vtanh.pop %v964
    %v966 = vmul.f32 %v965, 0.5
    %v967 = vadd.f32 %v966, 0.5
    %v968 = vtanh.pop %v958
    %v969 = vmul.f32 %v959, 0.5
    %v970 = vtanh.pop %v969
    %v971 = vmul.f32 %v970, 0.5
    %v972 = vadd.f32 %v971, 0.5
    %v973 = vmul.f32 %v967, %v806
    %v974 = vmul.f32 %v963, %v968
    %v975 = vadd.f32 %v973, %v974
    %v976 = vtanh.pop %v975
    %v977 = vmul.f32 %v972, %v976
    %s978 = scalar_lea.vmem [#allocation2], 96
    %v979 = vld [vmem:[%s978] sm:$0xff]
    %v980 = vld [vmem:[%s978 + $0x8] sm:$0xff]
    %v981 = vld [vmem:[%s978 + $0x10] sm:$0xff]
    %v982 = vld [vmem:[%s978 + $0x18] sm:$0xff]
    %983 = vmatprep.subr.mxu0 %v413
    %984 = vmatpush1.msra.mxu0 %v412
    %985 = vmatprep.subr.mxu0 %v417
    %986 = vmatpush1.msra.mxu0 %v416
    %987 = vmatprep.subr.mxu0 %v421
    %988 = vmatpush1.msra.mxu0 %v420
    %989 = vmatprep.subr.mxu0 %v425
    %990 = vmatpush1.msra.mxu0 %v424
    %991 = vmatprep.subr.mxu0 %v429
    %992 = vmatpush1.msra.mxu0 %v428
    %993 = vmatprep.subr.mxu0 %v433
    %994 = vmatpush1.msra.mxu0 %v432
    %995 = vmatprep.subr.mxu0 %v437
    %996 = vmatpush1.msra.mxu0 %v436
    %997 = vmatprep.subr.mxu0 %v441
    %998 = vmatpush1.msra.mxu0 %v440
    %999 = vmatprep.subr.mxu0 %v445
    %1000 = vmatpush1.msra.mxu0 %v444
    %1001 = vmatprep.subr.mxu0 %v449
    %1002 = vmatpush1.msra.mxu0 %v448
    %1003 = vmatprep.subr.mxu0 %v453
    %1004 = vmatpush1.msra.mxu0 %v452
    %1005 = vmatprep.subr.mxu0 %v457
    %1006 = vmatpush1.msra.mxu0 %v456
    %1007 = vmatprep.subr.mxu0 %v461
    %1008 = vmatpush1.msra.mxu0 %v460
    %1009 = vmatprep.subr.mxu0 %v465
    %1010 = vmatpush1.msra.mxu0 %v464
    %1011 = vmatprep.subr.mxu0 %v469
    %1012 = vmatpush1.msra.mxu0 %v468
    %1013 = vmatprep.subr.mxu0 %v473
    %1014 = vmatpush1.msra.mxu0 %v472
    %1015 = vmatprep.subr.mxu0 0.0
    %1016 = vmatpush1.msra.mxu0 0.0
    %1017 = vmatprep.subr.mxu0 0.0
    %1018 = vmatpush1.msra.mxu0 0.0
    %1019 = vmatprep.subr.mxu0 0.0
    %1020 = vmatpush1.msra.mxu0 0.0
    %1021 = vmatprep.subr.mxu0 0.0
    %1022 = vmatpush1.msra.mxu0 0.0
    %1023 = vmatprep.subr.mxu0 0.0
    %1024 = vmatpush1.msra.mxu0 0.0
    %1025 = vmatprep.subr.mxu0 0.0
    %1026 = vmatpush1.msra.mxu0 0.0
    %1027 = vmatprep.subr.mxu0 0.0
    %1028 = vmatpush1.msra.mxu0 0.0
    %1029 = vmatprep.subr.mxu0 0.0
    %1030 = vmatpush1.msra.mxu0 0.0
    %1031 = vmatprep.subr.mxu0 0.0
    %1032 = vmatpush1.msra.mxu0 0.0
    %1033 = vmatprep.subr.mxu0 0.0
    %1034 = vmatpush1.msra.mxu0 0.0
    %1035 = vmatprep.subr.mxu0 0.0
    %1036 = vmatpush1.msra.mxu0 0.0
    %1037 = vmatprep.subr.mxu0 0.0
    %1038 = vmatpush1.msra.mxu0 0.0
    %1039 = vmatprep.subr.mxu0 0.0
    %1040 = vmatpush1.msra.mxu0 0.0
    %1041 = vmatprep.subr.mxu0 0.0
    %1042 = vmatpush1.msra.mxu0 0.0
    %1043 = vmatprep.subr.mxu0 0.0
    %1044 = vmatpush1.msra.mxu0 0.0
    %1045 = vmatprep.subr.mxu0 0.0
    %1046 = vmatpush1.msra.mxu0 0.0
    %1047 = vmatprep.mubr.f32.mxu0 0.0
    %1048 = vmatmul.mubr.f32.gmra.mrb[0].mxu0 %v977
    %v1049 = vpop.f32.mrb[0].mxu0
    %v1050 = vadd.f32 0.0, %v1049
    %v1051 = vpop.f32.mrb[0].mxu0
    %v1052 = vadd.f32 0.0, %v1051
    %1053 = vdwg.mxu0
    %1054 = vmatprep.subr.mxu0 %v415
    %1055 = vmatpush1.msra.mxu0 %v414
    %1056 = vmatprep.subr.mxu0 %v419
    %1057 = vmatpush1.msra.mxu0 %v418
    %1058 = vmatprep.subr.mxu0 %v423
    %1059 = vmatpush1.msra.mxu0 %v422
    %1060 = vmatprep.subr.mxu0 %v427
    %1061 = vmatpush1.msra.mxu0 %v426
    %1062 = vmatprep.subr.mxu0 %v431
    %1063 = vmatpush1.msra.mxu0 %v430
    %1064 = vmatprep.subr.mxu0 %v435
    %1065 = vmatpush1.msra.mxu0 %v434
    %1066 = vmatprep.subr.mxu0 %v439
    %1067 = vmatpush1.msra.mxu0 %v438
    %1068 = vmatprep.subr.mxu0 %v443
    %1069 = vmatpush1.msra.mxu0 %v442
    %1070 = vmatprep.subr.mxu0 %v447
    %1071 = vmatpush1.msra.mxu0 %v446
    %1072 = vmatprep.subr.mxu0 %v451
    %1073 = vmatpush1.msra.mxu0 %v450
    %1074 = vmatprep.subr.mxu0 %v455
    %1075 = vmatpush1.msra.mxu0 %v454
    %1076 = vmatprep.subr.mxu0 %v459
    %1077 = vmatpush1.msra.mxu0 %v458
    %1078 = vmatprep.subr.mxu0 %v463
    %1079 = vmatpush1.msra.mxu0 %v462
    %1080 = vmatprep.subr.mxu0 %v467
    %1081 = vmatpush1.msra.mxu0 %v466
    %1082 = vmatprep.subr.mxu0 %v471
    %1083 = vmatpush1.msra.mxu0 %v470
    %1084 = vmatprep.subr.mxu0 %v475
    %1085 = vmatpush1.msra.mxu0 %v474
    %1086 = vmatprep.subr.mxu0 0.0
    %1087 = vmatpush1.msra.mxu0 0.0
    %1088 = vmatprep.subr.mxu0 0.0
    %1089 = vmatpush1.msra.mxu0 0.0
    %1090 = vmatprep.subr.mxu0 0.0
    %1091 = vmatpush1.msra.mxu0 0.0
    %1092 = vmatprep.subr.mxu0 0.0
    %1093 = vmatpush1.msra.mxu0 0.0
    %1094 = vmatprep.subr.mxu0 0.0
    %1095 = vmatpush1.msra.mxu0 0.0
    %1096 = vmatprep.subr.mxu0 0.0
    %1097 = vmatpush1.msra.mxu0 0.0
    %1098 = vmatprep.subr.mxu0 0.0
    %1099 = vmatpush1.msra.mxu0 0.0
    %1100 = vmatprep.subr.mxu0 0.0
    %1101 = vmatpush1.msra.mxu0 0.0
    %1102 = vmatprep.subr.mxu0 0.0
    %1103 = vmatpush1.msra.mxu0 0.0
    %1104 = vmatprep.subr.mxu0 0.0
    %1105 = vmatpush1.msra.mxu0 0.0
    %1106 = vmatprep.subr.mxu0 0.0
    %1107 = vmatpush1.msra.mxu0 0.0
    %1108 = vmatprep.subr.mxu0 0.0
    %1109 = vmatpush1.msra.mxu0 0.0
    %1110 = vmatprep.subr.mxu0 0.0
    %1111 = vmatpush1.msra.mxu0 0.0
    %1112 = vmatprep.subr.mxu0 0.0
    %1113 = vmatpush1.msra.mxu0 0.0
    %1114 = vmatprep.subr.mxu0 0.0
    %1115 = vmatpush1.msra.mxu0 0.0
    %1116 = vmatprep.subr.mxu0 0.0
    %1117 = vmatpush1.msra.mxu0 0.0
    %1118 = vmatprep.mubr.f32.mxu0 0.0
    %1119 = vmatmul.mubr.f32.gmra.mrb[0].mxu0 %v977
    %v1120 = vpop.f32.mrb[0].mxu0
    %v1121 = vadd.f32 0.0, %v1120
    %v1122 = vpop.f32.mrb[0].mxu0
    %v1123 = vadd.f32 0.0, %v1122
    %1124 = vdwg.mxu0
    %v1125 = vadd.f32 %v979, %v1050
    %v1126 = vadd.f32 %v980, %v1052
    %v1127 = vadd.f32 %v981, %v1121
    %v1128 = vadd.f32 %v982, %v1123
    %v1129 = vmul.f32 %v1125, 0.5
    %v1130 = vtanh.pop %v1129
    %v1131 = vmul.f32 %v1130, 0.5
    %v1132 = vadd.f32 %v1131, 0.5
    %v1133 = vmul.f32 %v1126, 0.5
    %v1134 = vtanh.pop %v1133
    %v1135 = vmul.f32 %v1134, 0.5
    %v1136 = vadd.f32 %v1135, 0.5
    %v1137 = vtanh.pop %v1127
    %v1138 = vmul.f32 %v1128, 0.5
    %v1139 = vtanh.pop %v1138
    %v1140 = vmul.f32 %v1139, 0.5
    %v1141 = vadd.f32 %v1140, 0.5
    %v1142 = vmul.f32 %v1136, %v975
    %v1143 = vmul.f32 %v1132, %v1137
    %v1144 = vadd.f32 %v1142, %v1143
    %v1145 = vtanh.pop %v1144
    %v1146 = vmul.f32 %v1141, %v1145
    %s1147 = scalar_lea.vmem [#allocation2], 128
    %v1148 = vld [vmem:[%s1147] sm:$0xff]
    %v1149 = vld [vmem:[%s1147 + $0x8] sm:$0xff]
    %v1150 = vld [vmem:[%s1147 + $0x10] sm:$0xff]
    %v1151 = vld [vmem:[%s1147 + $0x18] sm:$0xff]
    %1152 = vmatprep.subr.mxu0 %v413
    %1153 = vmatpush1.msra.mxu0 %v412
    %1154 = vmatprep.subr.mxu0 %v417
    %1155 = vmatpush1.msra.mxu0 %v416
    %1156 = vmatprep.subr.mxu0 %v421
    %1157 = vmatpush1.msra.mxu0 %v420
    %1158 = vmatprep.subr.mxu0 %v425
    %1159 = vmatpush1.msra.mxu0 %v424
    %1160 = vmatprep.subr.mxu0 %v429
    %1161 = vmatpush1.msra.mxu0 %v428
    %1162 = vmatprep.subr.mxu0 %v433
    %1163 = vmatpush1.msra.mxu0 %v432
    %1164 = vmatprep.subr.mxu0 %v437
    %1165 = vmatpush1.msra.mxu0 %v436
    %1166 = vmatprep.subr.mxu0 %v441
    %1167 = vmatpush1.msra.mxu0 %v440
    %1168 = vmatprep.subr.mxu0 %v445
    %1169 = vmatpush1.msra.mxu0 %v444
    %1170 = vmatprep.subr.mxu0 %v449
    %1171 = vmatpush1.msra.mxu0 %v448
    %1172 = vmatprep.subr.mxu0 %v453
    %1173 = vmatpush1.msra.mxu0 %v452
    %1174 = vmatprep.subr.mxu0 %v457
    %1175 = vmatpush1.msra.mxu0 %v456
    %1176 = vmatprep.subr.mxu0 %v461
    %1177 = vmatpush1.msra.mxu0 %v460
    %1178 = vmatprep.subr.mxu0 %v465
    %1179 = vmatpush1.msra.mxu0 %v464
    %1180 = vmatprep.subr.mxu0 %v469
    %1181 = vmatpush1.msra.mxu0 %v468
    %1182 = vmatprep.subr.mxu0 %v473
    %1183 = vmatpush1.msra.mxu0 %v472
    %1184 = vmatprep.subr.mxu0 0.0
    %1185 = vmatpush1.msra.mxu0 0.0
    %1186 = vmatprep.subr.mxu0 0.0
    %1187 = vmatpush1.msra.mxu0 0.0
    %1188 = vmatprep.subr.mxu0 0.0
    %1189 = vmatpush1.msra.mxu0 0.0
    %1190 = vmatprep.subr.mxu0 0.0
    %1191 = vmatpush1.msra.mxu0 0.0
    %1192 = vmatprep.subr.mxu0 0.0
    %1193 = vmatpush1.msra.mxu0 0.0
    %1194 = vmatprep.subr.mxu0 0.0
    %1195 = vmatpush1.msra.mxu0 0.0
    %1196 = vmatprep.subr.mxu0 0.0
    %1197 = vmatpush1.msra.mxu0 0.0
    %1198 = vmatprep.subr.mxu0 0.0
    %1199 = vmatpush1.msra.mxu0 0.0
    %1200 = vmatprep.subr.mxu0 0.0
    %1201 = vmatpush1.msra.mxu0 0.0
    %1202 = vmatprep.subr.mxu0 0.0
    %1203 = vmatpush1.msra.mxu0 0.0
    %1204 = vmatprep.subr.mxu0 0.0
    %1205 = vmatpush1.msra.mxu0 0.0
    %1206 = vmatprep.subr.mxu0 0.0
    %1207 = vmatpush1.msra.mxu0 0.0
    %1208 = vmatprep.subr.mxu0 0.0
    %1209 = vmatpush1.msra.mxu0 0.0
    %1210 = vmatprep.subr.mxu0 0.0
    %1211 = vmatpush1.msra.mxu0 0.0
    %1212 = vmatprep.subr.mxu0 0.0
    %1213 = vmatpush1.msra.mxu0 0.0
    %1214 = vmatprep.subr.mxu0 0.0
    %1215 = vmatpush1.msra.mxu0 0.0
    %1216 = vmatprep.mubr.f32.mxu0 0.0
    %1217 = vmatmul.mubr.f32.gmra.mrb[0].mxu0 %v1146
    %v1218 = vpop.f32.mrb[0].mxu0
    %v1219 = vadd.f32 0.0, %v1218
    %v1220 = vpop.f32.mrb[0].mxu0
    %v1221 = vadd.f32 0.0, %v1220
    %1222 = vdwg.mxu0
    %1223 = vmatprep.subr.mxu0 %v415
    %1224 = vmatpush1.msra.mxu0 %v414
    %1225 = vmatprep.subr.mxu0 %v419
    %1226 = vmatpush1.msra.mxu0 %v418
    %1227 = vmatprep.subr.mxu0 %v423
    %1228 = vmatpush1.msra.mxu0 %v422
    %1229 = vmatprep.subr.mxu0 %v427
    %1230 = vmatpush1.msra.mxu0 %v426
    %1231 = vmatprep.subr.mxu0 %v431
    %1232 = vmatpush1.msra.mxu0 %v430
    %1233 = vmatprep.subr.mxu0 %v435
    %1234 = vmatpush1.msra.mxu0 %v434
    %1235 = vmatprep.subr.mxu0 %v439
    %1236 = vmatpush1.msra.mxu0 %v438
    %1237 = vmatprep.subr.mxu0 %v443
    %1238 = vmatpush1.msra.mxu0 %v442
    %1239 = vmatprep.subr.mxu0 %v447
    %1240 = vmatpush1.msra.mxu0 %v446
    %1241 = vmatprep.subr.mxu0 %v451
    %1242 = vmatpush1.msra.mxu0 %v450
    %1243 = vmatprep.subr.mxu0 %v455
    %1244 = vmatpush1.msra.mxu0 %v454
    %1245 = vmatprep.subr.mxu0 %v459
    %1246 = vmatpush1.msra.mxu0 %v458
    %1247 = vmatprep.subr.mxu0 %v463
    %1248 = vmatpush1.msra.mxu0 %v462
    %1249 = vmatprep.subr.mxu0 %v467
    %1250 = vmatpush1.msra.mxu0 %v466
    %1251 = vmatprep.subr.mxu0 %v471
    %1252 = vmatpush1.msra.mxu0 %v470
    %1253 = vmatprep.subr.mxu0 %v475
    %1254 = vmatpush1.msra.mxu0 %v474
    %1255 = vmatprep.subr.mxu0 0.0
    %1256 = vmatpush1.msra.mxu0 0.0
    %1257 = vmatprep.subr.mxu0 0.0
    %1258 = vmatpush1.msra.mxu0 0.0
    %1259 = vmatprep.subr.mxu0 0.0
    %1260 = vmatpush1.msra.mxu0 0.0
    %1261 = vmatprep.subr.mxu0 0.0
    %1262 = vmatpush1.msra.mxu0 0.0
    %1263 = vmatprep.subr.mxu0 0.0
    %1264 = vmatpush1.msra.mxu0 0.0
    %1265 = vmatprep.subr.mxu0 0.0
    %1266 = vmatpush1.msra.mxu0 0.0
    %1267 = vmatprep.subr.mxu0 0.0
    %1268 = vmatpush1.msra.mxu0 0.0
    %1269 = vmatprep.subr.mxu0 0.0
    %1270 = vmatpush1.msra.mxu0 0.0
    %1271 = vmatprep.subr.mxu0 0.0
    %1272 = vmatpush1.msra.mxu0 0.0
    %1273 = vmatprep.subr.mxu0 0.0
    %1274 = vmatpush1.msra.mxu0 0.0
    %1275 = vmatprep.subr.mxu0 0.0
    %1276 = vmatpush1.msra.mxu0 0.0
    %1277 = vmatprep.subr.mxu0 0.0
    %1278 = vmatpush1.msra.mxu0 0.0
    %1279 = vmatprep.subr.mxu0 0.0
    %1280 = vmatpush1.msra.mxu0 0.0
    %1281 = vmatprep.subr.mxu0 0.0
    %1282 = vmatpush1.msra.mxu0 0.0
    %1283 = vmatprep.subr.mxu0 0.0
    %1284 = vmatpush1.msra.mxu0 0.0
    %1285 = vmatprep.subr.mxu0 0.0
    %1286 = vmatpush1.msra.mxu0 0.0
    %1287 = vmatprep.mubr.f32.mxu0 0.0
    %1288 = vmatmul.mubr.f32.gmra.mrb[0].mxu0 %v1146
    %v1289 = vpop.f32.mrb[0].mxu0
    %v1290 = vadd.f32 0.0, %v1289
    %v1291 = vpop.f32.mrb[0].mxu0
    %v1292 = vadd.f32 0.0, %v1291
    %1293 = vdwg.mxu0
    %v1294 = vadd.f32 %v1148, %v1219
    %v1295 = vadd.f32 %v1149, %v1221
    %v1296 = vadd.f32 %v1150, %v1290
    %v1297 = vadd.f32 %v1151, %v1292
    %v1298 = vmul.f32 %v1294, 0.5
    %v1299 = vtanh.pop %v1298
    %v1300 = vmul.f32 %v1299, 0.5
    %v1301 = vadd.f32 %v1300, 0.5
    %v1302 = vmul.f32 %v1295, 0.5
    %v1303 = vtanh.pop %v1302
    %v1304 = vmul.f32 %v1303, 0.5
    %v1305 = vadd.f32 %v1304, 0.5
    %v1306 = vtanh.pop %v1296
    %v1307 = vmul.f32 %v1297, 0.5
    %v1308 = vtanh.pop %v1307
    %v1309 = vmul.f32 %v1308, 0.5
    %v1310 = vadd.f32 %v1309, 0.5
    %v1311 = vmul.f32 %v1305, %v1144
    %v1312 = vmul.f32 %v1301, %v1306
    %v1313 = vadd.f32 %v1311, %v1312
    %v1314 = vtanh.pop %v1313
    %v1315 = vmul.f32 %v1310, %v1314
    %s1316 = scalar_lea.vmem [#allocation2], 160
    %v1317 = vld [vmem:[%s1316] sm:$0xff]
    %v1318 = vld [vmem:[%s1316 + $0x8] sm:$0xff]
    %v1319 = vld [vmem:[%s1316 + $0x10] sm:$0xff]
    %v1320 = vld [vmem:[%s1316 + $0x18] sm:$0xff]
    %1321 = vmatprep.subr.mxu0 %v413
    %1322 = vmatpush1.msra.mxu0 %v412
    %1323 = vmatprep.subr.mxu0 %v417
    %1324 = vmatpush1.msra.mxu0 %v416
    %1325 = vmatprep.subr.mxu0 %v421
    %1326 = vmatpush1.msra.mxu0 %v420
    %1327 = vmatprep.subr.mxu0 %v425
    %1328 = vmatpush1.msra.mxu0 %v424
    %1329 = vmatprep.subr.mxu0 %v429
    %1330 = vmatpush1.msra.mxu0 %v428
    %1331 = vmatprep.subr.mxu0 %v433
    %1332 = vmatpush1.msra.mxu0 %v432
    %1333 = vmatprep.subr.mxu0 %v437
    %1334 = vmatpush1.msra.mxu0 %v436
    %1335 = vmatprep.subr.mxu0 %v441
    %1336 = vmatpush1.msra.mxu0 %v440
    %1337 = vmatprep.subr.mxu0 %v445
    %1338 = vmatpush1.msra.mxu0 %v444
    %1339 = vmatprep.subr.mxu0 %v449
    %1340 = vmatpush1.msra.mxu0 %v448
    %1341 = vmatprep.subr.mxu0 %v453
    %1342 = vmatpush1.msra.mxu0 %v452
    %1343 = vmatprep.subr.mxu0 %v457
    %1344 = vmatpush1.msra.mxu0 %v456
    %1345 = vmatprep.subr.mxu0 %v461
    %1346 = vmatpush1.msra.mxu0 %v460
    %1347 = vmatprep.subr.mxu0 %v465
    %1348 = vmatpush1.msra.mxu0 %v464
    %1349 = vmatprep.subr.mxu0 %v469
    %1350 = vmatpush1.msra.mxu0 %v468
    %1351 = vmatprep.subr.mxu0 %v473
    %1352 = vmatpush1.msra.mxu0 %v472
    %1353 = vmatprep.subr.mxu0 0.0
    %1354 = vmatpush1.msra.mxu0 0.0
    %1355 = vmatprep.subr.mxu0 0.0
    %1356 = vmatpush1.msra.mxu0 0.0
    %1357 = vmatprep.subr.mxu0 0.0
    %1358 = vmatpush1.msra.mxu0 0.0
    %1359 = vmatprep.subr.mxu0 0.0
    %1360 = vmatpush1.msra.mxu0 0.0
    %1361 = vmatprep.subr.mxu0 0.0
    %1362 = vmatpush1.msra.mxu0 0.0
    %1363 = vmatprep.subr.mxu0 0.0
    %1364 = vmatpush1.msra.mxu0 0.0
    %1365 = vmatprep.subr.mxu0 0.0
    %1366 = vmatpush1.msra.mxu0 0.0
    %1367 = vmatprep.subr.mxu0 0.0
    %1368 = vmatpush1.msra.mxu0 0.0
    %1369 = vmatprep.subr.mxu0 0.0
    %1370 = vmatpush1.msra.mxu0 0.0
    %1371 = vmatprep.subr.mxu0 0.0
    %1372 = vmatpush1.msra.mxu0 0.0
    %1373 = vmatprep.subr.mxu0 0.0
    %1374 = vmatpush1.msra.mxu0 0.0
    %1375 = vmatprep.subr.mxu0 0.0
    %1376 = vmatpush1.msra.mxu0 0.0
    %1377 = vmatprep.subr.mxu0 0.0
    %1378 = vmatpush1.msra.mxu0 0.0
    %1379 = vmatprep.subr.mxu0 0.0
    %1380 = vmatpush1.msra.mxu0 0.0
    %1381 = vmatprep.subr.mxu0 0.0
    %1382 = vmatpush1.msra.mxu0 0.0
    %1383 = vmatprep.subr.mxu0 0.0
    %1384 = vmatpush1.msra.mxu0 0.0
    %1385 = vmatprep.mubr.f32.mxu0 0.0
    %1386 = vmatmul.mubr.f32.gmra.mrb[0].mxu0 %v1315
    %v1387 = vpop.f32.mrb[0].mxu0
    %v1388 = vadd.f32 0.0, %v1387
    %v1389 = vpop.f32.mrb[0].mxu0
    %v1390 = vadd.f32 0.0, %v1389
    %1391 = vdwg.mxu0
    %1392 = vmatprep.subr.mxu0 %v415
    %1393 = vmatpush1.msra.mxu0 %v414
    %1394 = vmatprep.subr.mxu0 %v419
    %1395 = vmatpush1.msra.mxu0 %v418
    %1396 = vmatprep.subr.mxu0 %v423
    %1397 = vmatpush1.msra.mxu0 %v422
    %1398 = vmatprep.subr.mxu0 %v427
    %1399 = vmatpush1.msra.mxu0 %v426
    %1400 = vmatprep.subr.mxu0 %v431
    %1401 = vmatpush1.msra.mxu0 %v430
    %1402 = vmatprep.subr.mxu0 %v435
    %1403 = vmatpush1.msra.mxu0 %v434
    %1404 = vmatprep.subr.mxu0 %v439
    %1405 = vmatpush1.msra.mxu0 %v438
    %1406 = vmatprep.subr.mxu0 %v443
    %1407 = vmatpush1.msra.mxu0 %v442
    %1408 = vmatprep.subr.mxu0 %v447
    %1409 = vmatpush1.msra.mxu0 %v446
    %1410 = vmatprep.subr.mxu0 %v451
    %1411 = vmatpush1.msra.mxu0 %v450
    %1412 = vmatprep.subr.mxu0 %v455
    %1413 = vmatpush1.msra.mxu0 %v454
    %1414 = vmatprep.subr.mxu0 %v459
    %1415 = vmatpush1.msra.mxu0 %v458
    %1416 = vmatprep.subr.mxu0 %v463
    %1417 = vmatpush1.msra.mxu0 %v462
    %1418 = vmatprep.subr.mxu0 %v467
    %1419 = vmatpush1.msra.mxu0 %v466
    %1420 = vmatprep.subr.mxu0 %v471
    %1421 = vmatpush1.msra.mxu0 %v470
    %1422 = vmatprep.subr.mxu0 %v475
    %1423 = vmatpush1.msra.mxu0 %v474
    %1424 = vmatprep.subr.mxu0 0.0
    %1425 = vmatpush1.msra.mxu0 0.0
    %1426 = vmatprep.subr.mxu0 0.0
    %1427 = vmatpush1.msra.mxu0 0.0
    %1428 = vmatprep.subr.mxu0 0.0
    %1429 = vmatpush1.msra.mxu0 0.0
    %1430 = vmatprep.subr.mxu0 0.0
    %1431 = vmatpush1.msra.mxu0 0.0
    %1432 = vmatprep.subr.mxu0 0.0
    %1433 = vmatpush1.msra.mxu0 0.0
    %1434 = vmatprep.subr.mxu0 0.0
    %1435 = vmatpush1.msra.mxu0 0.0
    %1436 = vmatprep.subr.mxu0 0.0
    %1437 = vmatpush1.msra.mxu0 0.0
    %1438 = vmatprep.subr.mxu0 0.0
    %1439 = vmatpush1.msra.mxu0 0.0
    %1440 = vmatprep.subr.mxu0 0.0
    %1441 = vmatpush1.msra.mxu0 0.0
    %1442 = vmatprep.subr.mxu0 0.0
    %1443 = vmatpush1.msra.mxu0 0.0
    %1444 = vmatprep.subr.mxu0 0.0
    %1445 = vmatpush1.msra.mxu0 0.0
    %1446 = vmatprep.subr.mxu0 0.0
    %1447 = vmatpush1.msra.mxu0 0.0
    %1448 = vmatprep.subr.mxu0 0.0
    %1449 = vmatpush1.msra.mxu0 0.0
    %1450 = vmatprep.subr.mxu0 0.0
    %1451 = vmatpush1.msra.mxu0 0.0
    %1452 = vmatprep.subr.mxu0 0.0
    %1453 = vmatpush1.msra.mxu0 0.0
    %1454 = vmatprep.subr.mxu0 0.0
    %1455 = vmatpush1.msra.mxu0 0.0
    %1456 = vmatprep.mubr.f32.mxu0 0.0
    %1457 = vmatmul.mubr.f32.gmra.mrb[0].mxu0 %v1315
    %v1458 = vpop.f32.mrb[0].mxu0
    %v1459 = vadd.f32 0.0, %v1458
    %v1460 = vpop.f32.mrb[0].mxu0
    %v1461 = vadd.f32 0.0, %v1460
    %1462 = vdwg.mxu0
    %v1463 = vadd.f32 %v1317, %v1388
    %v1464 = vadd.f32 %v1318, %v1390
    %v1465 = vadd.f32 %v1319, %v1459
    %v1466 = vadd.f32 %v1320, %v1461
    %v1467 = vmul.f32 %v1463, 0.5
    %v1468 = vtanh.pop %v1467
    %v1469 = vmul.f32 %v1468, 0.5
    %v1470 = vadd.f32 %v1469, 0.5
    %v1471 = vmul.f32 %v1464, 0.5
    %v1472 = vtanh.pop %v1471
    %v1473 = vmul.f32 %v1472, 0.5
    %v1474 = vadd.f32 %v1473, 0.5
    %v1475 = vtanh.pop %v1465
    %v1476 = vmul.f32 %v1466, 0.5
    %v1477 = vtanh.pop %v1476
    %v1478 = vmul.f32 %v1477, 0.5
    %v1479 = vadd.f32 %v1478, 0.5
    %v1480 = vmul.f32 %v1474, %v1313
    %v1481 = vmul.f32 %v1470, %v1475
    %v1482 = vadd.f32 %v1480, %v1481
    %v1483 = vtanh.pop %v1482
    %v1484 = vmul.f32 %v1479, %v1483
    %s1485 = scalar_lea.vmem [#allocation2], 192
    %v1486 = vld [vmem:[%s1485] sm:$0xff]
    %v1487 = vld [vmem:[%s1485 + $0x8] sm:$0xff]
    %v1488 = vld [vmem:[%s1485 + $0x10] sm:$0xff]
    %v1489 = vld [vmem:[%s1485 + $0x18] sm:$0xff]
    %1490 = vmatprep.subr.mxu0 %v413
    %1491 = vmatpush1.msra.mxu0 %v412
    %1492 = vmatprep.subr.mxu0 %v417
    %1493 = vmatpush1.msra.mxu0 %v416
    %1494 = vmatprep.subr.mxu0 %v421
    %1495 = vmatpush1.msra.mxu0 %v420
    %1496 = vmatprep.subr.mxu0 %v425
    %1497 = vmatpush1.msra.mxu0 %v424
    %1498 = vmatprep.subr.mxu0 %v429
    %1499 = vmatpush1.msra.mxu0 %v428
    %1500 = vmatprep.subr.mxu0 %v433
    %1501 = vmatpush1.msra.mxu0 %v432
    %1502 = vmatprep.subr.mxu0 %v437
    %1503 = vmatpush1.msra.mxu0 %v436
    %1504 = vmatprep.subr.mxu0 %v441
    %1505 = vmatpush1.msra.mxu0 %v440
    %1506 = vmatprep.subr.mxu0 %v445
    %1507 = vmatpush1.msra.mxu0 %v444
    %1508 = vmatprep.subr.mxu0 %v449
    %1509 = vmatpush1.msra.mxu0 %v448
    %1510 = vmatprep.subr.mxu0 %v453
    %1511 = vmatpush1.msra.mxu0 %v452
    %1512 = vmatprep.subr.mxu0 %v457
    %1513 = vmatpush1.msra.mxu0 %v456
    %1514 = vmatprep.subr.mxu0 %v461
    %1515 = vmatpush1.msra.mxu0 %v460
    %1516 = vmatprep.subr.mxu0 %v465
    %1517 = vmatpush1.msra.mxu0 %v464
    %1518 = vmatprep.subr.mxu0 %v469
    %1519 = vmatpush1.msra.mxu0 %v468
    %1520 = vmatprep.subr.mxu0 %v473
    %1521 = vmatpush1.msra.mxu0 %v472
    %1522 = vmatprep.subr.mxu0 0.0
    %1523 = vmatpush1.msra.mxu0 0.0
    %1524 = vmatprep.subr.mxu0 0.0
    %1525 = vmatpush1.msra.mxu0 0.0
    %1526 = vmatprep.subr.mxu0 0.0
    %1527 = vmatpush1.msra.mxu0 0.0
    %1528 = vmatprep.subr.mxu0 0.0
    %1529 = vmatpush1.msra.mxu0 0.0
    %1530 = vmatprep.subr.mxu0 0.0
    %1531 = vmatpush1.msra.mxu0 0.0
    %1532 = vmatprep.subr.mxu0 0.0
    %1533 = vmatpush1.msra.mxu0 0.0
    %1534 = vmatprep.subr.mxu0 0.0
    %1535 = vmatpush1.msra.mxu0 0.0
    %1536 = vmatprep.subr.mxu0 0.0
    %1537 = vmatpush1.msra.mxu0 0.0
    %1538 = vmatprep.subr.mxu0 0.0
    %1539 = vmatpush1.msra.mxu0 0.0
    %1540 = vmatprep.subr.mxu0 0.0
    %1541 = vmatpush1.msra.mxu0 0.0
    %1542 = vmatprep.subr.mxu0 0.0
    %1543 = vmatpush1.msra.mxu0 0.0
    %1544 = vmatprep.subr.mxu0 0.0
    %1545 = vmatpush1.msra.mxu0 0.0
    %1546 = vmatprep.subr.mxu0 0.0
    %1547 = vmatpush1.msra.mxu0 0.0
    %1548 = vmatprep.subr.mxu0 0.0
    %1549 = vmatpush1.msra.mxu0 0.0
    %1550 = vmatprep.subr.mxu0 0.0
    %1551 = vmatpush1.msra.mxu0 0.0
    %1552 = vmatprep.subr.mxu0 0.0
    %1553 = vmatpush1.msra.mxu0 0.0
    %1554 = vmatprep.mubr.f32.mxu0 0.0
    %1555 = vmatmul.mubr.f32.gmra.mrb[0].mxu0 %v1484
    %v1556 = vpop.f32.mrb[0].mxu0
    %v1557 = vadd.f32 0.0, %v1556
    %v1558 = vpop.f32.mrb[0].mxu0
    %v1559 = vadd.f32 0.0, %v1558
    %1560 = vdwg.mxu0
    %1561 = vmatprep.subr.mxu0 %v415
    %1562 = vmatpush1.msra.mxu0 %v414
    %1563 = vmatprep.subr.mxu0 %v419
    %1564 = vmatpush1.msra.mxu0 %v418
    %1565 = vmatprep.subr.mxu0 %v423
    %1566 = vmatpush1.msra.mxu0 %v422
    %1567 = vmatprep.subr.mxu0 %v427
    %1568 = vmatpush1.msra.mxu0 %v426
    %1569 = vmatprep.subr.mxu0 %v431
    %1570 = vmatpush1.msra.mxu0 %v430
    %1571 = vmatprep.subr.mxu0 %v435
    %1572 = vmatpush1.msra.mxu0 %v434
    %1573 = vmatprep.subr.mxu0 %v439
    %1574 = vmatpush1.msra.mxu0 %v438
    %1575 = vmatprep.subr.mxu0 %v443
    %1576 = vmatpush1.msra.mxu0 %v442
    %1577 = vmatprep.subr.mxu0 %v447
    %1578 = vmatpush1.msra.mxu0 %v446
    %1579 = vmatprep.subr.mxu0 %v451
    %1580 = vmatpush1.msra.mxu0 %v450
    %1581 = vmatprep.subr.mxu0 %v455
    %1582 = vmatpush1.msra.mxu0 %v454
    %1583 = vmatprep.subr.mxu0 %v459
    %1584 = vmatpush1.msra.mxu0 %v458
    %1585 = vmatprep.subr.mxu0 %v463
    %1586 = vmatpush1.msra.mxu0 %v462
    %1587 = vmatprep.subr.mxu0 %v467
    %1588 = vmatpush1.msra.mxu0 %v466
    %1589 = vmatprep.subr.mxu0 %v471
    %1590 = vmatpush1.msra.mxu0 %v470
    %1591 = vmatprep.subr.mxu0 %v475
    %1592 = vmatpush1.msra.mxu0 %v474
    %1593 = vmatprep.subr.mxu0 0.0
    %1594 = vmatpush1.msra.mxu0 0.0
    %1595 = vmatprep.subr.mxu0 0.0
    %1596 = vmatpush1.msra.mxu0 0.0
    %1597 = vmatprep.subr.mxu0 0.0
    %1598 = vmatpush1.msra.mxu0 0.0
    %1599 = vmatprep.subr.mxu0 0.0
    %1600 = vmatpush1.msra.mxu0 0.0
    %1601 = vmatprep.subr.mxu0 0.0
    %1602 = vmatpush1.msra.mxu0 0.0
    %1603 = vmatprep.subr.mxu0 0.0
    %1604 = vmatpush1.msra.mxu0 0.0
    %1605 = vmatprep.subr.mxu0 0.0
    %1606 = vmatpush1.msra.mxu0 0.0
    %1607 = vmatprep.subr.mxu0 0.0
    %1608 = vmatpush1.msra.mxu0 0.0
    %1609 = vmatprep.subr.mxu0 0.0
    %1610 = vmatpush1.msra.mxu0 0.0
    %1611 = vmatprep.subr.mxu0 0.0
    %1612 = vmatpush1.msra.mxu0 0.0
    %1613 = vmatprep.subr.mxu0 0.0
    %1614 = vmatpush1.msra.mxu0 0.0
    %1615 = vmatprep.subr.mxu0 0.0
    %1616 = vmatpush1.msra.mxu0 0.0
    %1617 = vmatprep.subr.mxu0 0.0
    %1618 = vmatpush1.msra.mxu0 0.0
    %1619 = vmatprep.subr.mxu0 0.0
    %1620 = vmatpush1.msra.mxu0 0.0
    %1621 = vmatprep.subr.mxu0 0.0
    %1622 = vmatpush1.msra.mxu0 0.0
    %1623 = vmatprep.subr.mxu0 0.0
    %1624 = vmatpush1.msra.mxu0 0.0
    %1625 = vmatprep.mubr.f32.mxu0 0.0
    %1626 = vmatmul.mubr.f32.gmra.mrb[0].mxu0 %v1484
    %v1627 = vpop.f32.mrb[0].mxu0
    %v1628 = vadd.f32 0.0, %v1627
    %v1629 = vpop.f32.mrb[0].mxu0
    %v1630 = vadd.f32 0.0, %v1629
    %1631 = vdwg.mxu0
    %v1632 = vadd.f32 %v1486, %v1557
    %v1633 = vadd.f32 %v1487, %v1559
    %v1634 = vadd.f32 %v1488, %v1628
    %v1635 = vadd.f32 %v1489, %v1630
    %v1636 = vmul.f32 %v1632, 0.5
    %v1637 = vtanh.pop %v1636
    %v1638 = vmul.f32 %v1637, 0.5
    %v1639 = vadd.f32 %v1638, 0.5
    %v1640 = vmul.f32 %v1633, 0.5
    %v1641 = vtanh.pop %v1640
    %v1642 = vmul.f32 %v1641, 0.5
    %v1643 = vadd.f32 %v1642, 0.5
    %v1644 = vtanh.pop %v1634
    %v1645 = vmul.f32 %v1635, 0.5
    %v1646 = vtanh.pop %v1645
    %v1647 = vmul.f32 %v1646, 0.5
    %v1648 = vadd.f32 %v1647, 0.5
    %v1649 = vmul.f32 %v1643, %v1482
    %v1650 = vmul.f32 %v1639, %v1644
    %v1651 = vadd.f32 %v1649, %v1650
    %v1652 = vtanh.pop %v1651
    %v1653 = vmul.f32 %v1648, %v1652
    %s1654 = scalar_lea.vmem [#allocation2], 224
    %v1655 = vld [vmem:[%s1654] sm:$0xff]
    %v1656 = vld [vmem:[%s1654 + $0x8] sm:$0xff]
    %v1657 = vld [vmem:[%s1654 + $0x10] sm:$0xff]
    %v1658 = vld [vmem:[%s1654 + $0x18] sm:$0xff]
    %1659 = vmatprep.subr.mxu0 %v413
    %1660 = vmatpush1.msra.mxu0 %v412
    %1661 = vmatprep.subr.mxu0 %v417
    %1662 = vmatpush1.msra.mxu0 %v416
    %1663 = vmatprep.subr.mxu0 %v421
    %1664 = vmatpush1.msra.mxu0 %v420
    %1665 = vmatprep.subr.mxu0 %v425
    %1666 = vmatpush1.msra.mxu0 %v424
    %1667 = vmatprep.subr.mxu0 %v429
    %1668 = vmatpush1.msra.mxu0 %v428
    %1669 = vmatprep.subr.mxu0 %v433
    %1670 = vmatpush1.msra.mxu0 %v432
    %1671 = vmatprep.subr.mxu0 %v437
    %1672 = vmatpush1.msra.mxu0 %v436
    %1673 = vmatprep.subr.mxu0 %v441
    %1674 = vmatpush1.msra.mxu0 %v440
    %1675 = vmatprep.subr.mxu0 %v445
    %1676 = vmatpush1.msra.mxu0 %v444
    %1677 = vmatprep.subr.mxu0 %v449
    %1678 = vmatpush1.msra.mxu0 %v448
    %1679 = vmatprep.subr.mxu0 %v453
    %1680 = vmatpush1.msra.mxu0 %v452
    %1681 = vmatprep.subr.mxu0 %v457
    %1682 = vmatpush1.msra.mxu0 %v456
    %1683 = vmatprep.subr.mxu0 %v461
    %1684 = vmatpush1.msra.mxu0 %v460
    %1685 = vmatprep.subr.mxu0 %v465
    %1686 = vmatpush1.msra.mxu0 %v464
    %1687 = vmatprep.subr.mxu0 %v469
    %1688 = vmatpush1.msra.mxu0 %v468
    %1689 = vmatprep.subr.mxu0 %v473
    %1690 = vmatpush1.msra.mxu0 %v472
    %1691 = vmatprep.subr.mxu0 0.0
    %1692 = vmatpush1.msra.mxu0 0.0
    %1693 = vmatprep.subr.mxu0 0.0
    %1694 = vmatpush1.msra.mxu0 0.0
    %1695 = vmatprep.subr.mxu0 0.0
    %1696 = vmatpush1.msra.mxu0 0.0
    %1697 = vmatprep.subr.mxu0 0.0
    %1698 = vmatpush1.msra.mxu0 0.0
    %1699 = vmatprep.subr.mxu0 0.0
    %1700 = vmatpush1.msra.mxu0 0.0
    %1701 = vmatprep.subr.mxu0 0.0
    %1702 = vmatpush1.msra.mxu0 0.0
    %1703 = vmatprep.subr.mxu0 0.0
    %1704 = vmatpush1.msra.mxu0 0.0
    %1705 = vmatprep.subr.mxu0 0.0
    %1706 = vmatpush1.msra.mxu0 0.0
    %1707 = vmatprep.subr.mxu0 0.0
    %1708 = vmatpush1.msra.mxu0 0.0
    %1709 = vmatprep.subr.mxu0 0.0
    %1710 = vmatpush1.msra.mxu0 0.0
    %1711 = vmatprep.subr.mxu0 0.0
    %1712 = vmatpush1.msra.mxu0 0.0
    %1713 = vmatprep.subr.mxu0 0.0
    %1714 = vmatpush1.msra.mxu0 0.0
    %1715 = vmatprep.subr.mxu0 0.0
    %1716 = vmatpush1.msra.mxu0 0.0
    %1717 = vmatprep.subr.mxu0 0.0
    %1718 = vmatpush1.msra.mxu0 0.0
    %1719 = vmatprep.subr.mxu0 0.0
    %1720 = vmatpush1.msra.mxu0 0.0
    %1721 = vmatprep.subr.mxu0 0.0
    %1722 = vmatpush1.msra.mxu0 0.0
    %1723 = vmatprep.mubr.f32.mxu0 0.0
    %1724 = vmatmul.mubr.f32.gmra.mrb[0].mxu0 %v1653
    %v1725 = vpop.f32.mrb[0].mxu0
    %v1726 = vadd.f32 0.0, %v1725
    %v1727 = vpop.f32.mrb[0].mxu0
    %v1728 = vadd.f32 0.0, %v1727
    %1729 = vdwg.mxu0
    %1730 = vmatprep.subr.mxu0 %v415
    %1731 = vmatpush1.msra.mxu0 %v414
    %1732 = vmatprep.subr.mxu0 %v419
    %1733 = vmatpush1.msra.mxu0 %v418
    %1734 = vmatprep.subr.mxu0 %v423
    %1735 = vmatpush1.msra.mxu0 %v422
    %1736 = vmatprep.subr.mxu0 %v427
    %1737 = vmatpush1.msra.mxu0 %v426
    %1738 = vmatprep.subr.mxu0 %v431
    %1739 = vmatpush1.msra.mxu0 %v430
    %1740 = vmatprep.subr.mxu0 %v435
    %1741 = vmatpush1.msra.mxu0 %v434
    %1742 = vmatprep.subr.mxu0 %v439
    %1743 = vmatpush1.msra.mxu0 %v438
    %1744 = vmatprep.subr.mxu0 %v443
    %1745 = vmatpush1.msra.mxu0 %v442
    %1746 = vmatprep.subr.mxu0 %v447
    %1747 = vmatpush1.msra.mxu0 %v446
    %1748 = vmatprep.subr.mxu0 %v451
    %1749 = vmatpush1.msra.mxu0 %v450
    %1750 = vmatprep.subr.mxu0 %v455
    %1751 = vmatpush1.msra.mxu0 %v454
    %1752 = vmatprep.subr.mxu0 %v459
    %1753 = vmatpush1.msra.mxu0 %v458
    %1754 = vmatprep.subr.mxu0 %v463
    %1755 = vmatpush1.msra.mxu0 %v462
    %1756 = vmatprep.subr.mxu0 %v467
    %1757 = vmatpush1.msra.mxu0 %v466
    %1758 = vmatprep.subr.mxu0 %v471
    %1759 = vmatpush1.msra.mxu0 %v470
    %1760 = vmatprep.subr.mxu0 %v475
    %1761 = vmatpush1.msra.mxu0 %v474
    %1762 = vmatprep.subr.mxu0 0.0
    %1763 = vmatpush1.msra.mxu0 0.0
    %1764 = vmatprep.subr.mxu0 0.0
    %1765 = vmatpush1.msra.mxu0 0.0
    %1766 = vmatprep.subr.mxu0 0.0
    %1767 = vmatpush1.msra.mxu0 0.0
    %1768 = vmatprep.subr.mxu0 0.0
    %1769 = vmatpush1.msra.mxu0 0.0
    %1770 = vmatprep.subr.mxu0 0.0
    %1771 = vmatpush1.msra.mxu0 0.0
    %1772 = vmatprep.subr.mxu0 0.0
    %1773 = vmatpush1.msra.mxu0 0.0
    %1774 = vmatprep.subr.mxu0 0.0
    %1775 = vmatpush1.msra.mxu0 0.0
    %1776 = vmatprep.subr.mxu0 0.0
    %1777 = vmatpush1.msra.mxu0 0.0
    %1778 = vmatprep.subr.mxu0 0.0
    %1779 = vmatpush1.msra.mxu0 0.0
    %1780 = vmatprep.subr.mxu0 0.0
    %1781 = vmatpush1.msra.mxu0 0.0
    %1782 = vmatprep.subr.mxu0 0.0
    %1783 = vmatpush1.msra.mxu0 0.0
    %1784 = vmatprep.subr.mxu0 0.0
    %1785 = vmatpush1.msra.mxu0 0.0
    %1786 = vmatprep.subr.mxu0 0.0
    %1787 = vmatpush1.msra.mxu0 0.0
    %1788 = vmatprep.subr.mxu0 0.0
    %1789 = vmatpush1.msra.mxu0 0.0
    %1790 = vmatprep.subr.mxu0 0.0
    %1791 = vmatpush1.msra.mxu0 0.0
    %1792 = vmatprep.subr.mxu0 0.0
    %1793 = vmatpush1.msra.mxu0 0.0
    %1794 = vmatprep.mubr.f32.mxu0 0.0
    %1795 = vmatmul.mubr.f32.gmra.mrb[0].mxu0 %v1653
    %v1796 = vpop.f32.mrb[0].mxu0
    %v1797 = vadd.f32 0.0, %v1796
    %v1798 = vpop.f32.mrb[0].mxu0
    %v1799 = vadd.f32 0.0, %v1798
    %1800 = vdwg.mxu0
    %v1801 = vadd.f32 %v1655, %v1726
    %v1802 = vadd.f32 %v1656, %v1728
    %v1803 = vadd.f32 %v1657, %v1797
    %v1804 = vadd.f32 %v1658, %v1799
    %v1805 = vmul.f32 %v1801, 0.5
    %v1806 = vtanh.pop %v1805
    %v1807 = vmul.f32 %v1806, 0.5
    %v1808 = vadd.f32 %v1807, 0.5
    %v1809 = vmul.f32 %v1802, 0.5
    %v1810 = vtanh.pop %v1809
    %v1811 = vmul.f32 %v1810, 0.5
    %v1812 = vadd.f32 %v1811, 0.5
    %v1813 = vtanh.pop %v1803
    %v1814 = vmul.f32 %v1804, 0.5
    %v1815 = vtanh.pop %v1814
    %v1816 = vmul.f32 %v1815, 0.5
    %v1817 = vadd.f32 %v1816, 0.5
    %v1818 = vmul.f32 %v1812, %v1651
    %v1819 = vmul.f32 %v1808, %v1813
    %v1820 = vadd.f32 %v1818, %v1819
    %v1821 = vtanh.pop %v1820
    %v1822 = vmul.f32 %v1817, %v1821
    %1823 = vst [vmem:[#allocation3] sm:$0xff] %v1822
    %1824 = vst [vmem:[#allocation4] sm:$0xff] %v1820
    // Predicated region
    $region46: #{tpu_custom_call.1} parent=1 // pred_check
      %p1825 = pneg %p79
    $region47: #{tpu_custom_call.1} parent=1 // pred_check_branch
      %1827 = sbr.rel (%p1825) target = $region49
    $region48: #{tpu_custom_call.1} parent=1 // pred_region
      %v1828 = vld [vmem:[#allocation11] sm:$0xff]
      %v1829 = vld [vmem:[#allocation11 + $0x8] sm:$0xff]
      %v1830 = vld [vmem:[#allocation11 + $0x10] sm:$0xff]
      %v1831 = vld [vmem:[#allocation11 + $0x18] sm:$0xff]
      %v1832 = vld [vmem:[#allocation11 + $0x20] sm:$0xff]
      %v1833 = vld [vmem:[#allocation11 + $0x28] sm:$0xff]
      %v1834 = vld [vmem:[#allocation11 + $0x30] sm:$0xff]
      %v1835 = vld [vmem:[#allocation11 + $0x38] sm:$0xff]
      %v1836 = vld [vmem:[#allocation11 + $0x40] sm:$0xff]
      %v1837 = vld [vmem:[#allocation11 + $0x48] sm:$0xff]
      %v1838 = vld [vmem:[#allocation11 + $0x50] sm:$0xff]
      %v1839 = vld [vmem:[#allocation11 + $0x58] sm:$0xff]
      %v1840 = vld [vmem:[#allocation11 + $0x60] sm:$0xff]
      %v1841 = vld [vmem:[#allocation11 + $0x68] sm:$0xff]
      %v1842 = vld [vmem:[#allocation11 + $0x70] sm:$0xff]
      %v1843 = vld [vmem:[#allocation11 + $0x78] sm:$0xff]
      %v1844 = vld [vmem:[%s5] sm:$0x1]
      %v1846 = vlaneseq
      %v1847 = vshrl.u32 %v1846, 7
      %v1848 = vsub.s32 0, %v1847
      %v1849 = vrot.slane %v1844, %v1848
      %1851 = vmatprep.subr.mxu0 0.0
      %1852 = vmatpush1.msra.mxu0 %v1828
      %1853 = vmatprep.subr.mxu0 0.0
      %1854 = vmatpush1.msra.mxu0 %v1829
      %1855 = vmatprep.subr.mxu0 0.0
      %1856 = vmatpush1.msra.mxu0 %v1830
      %1857 = vmatprep.subr.mxu0 0.0
      %1858 = vmatpush1.msra.mxu0 %v1831
      %1859 = vmatprep.subr.mxu0 0.0
      %1860 = vmatpush1.msra.mxu0 %v1832
      %1861 = vmatprep.subr.mxu0 0.0
      %1862 = vmatpush1.msra.mxu0 %v1833
      %1863 = vmatprep.subr.mxu0 0.0
      %1864 = vmatpush1.msra.mxu0 %v1834
      %1865 = vmatprep.subr.mxu0 0.0
      %1866 = vmatpush1.msra.mxu0 %v1835
      %1867 = vmatprep.subr.mxu0 0.0
      %1868 = vmatpush1.msra.mxu0 %v1836
      %1869 = vmatprep.subr.mxu0 0.0
      %1870 = vmatpush1.msra.mxu0 %v1837
      %1871 = vmatprep.subr.mxu0 0.0
      %1872 = vmatpush1.msra.mxu0 %v1838
      %1873 = vmatprep.subr.mxu0 0.0
      %1874 = vmatpush1.msra.mxu0 %v1839
      %1875 = vmatprep.subr.mxu0 0.0
      %1876 = vmatpush1.msra.mxu0 %v1840
      %1877 = vmatprep.subr.mxu0 0.0
      %1878 = vmatpush1.msra.mxu0 %v1841
      %1879 = vmatprep.subr.mxu0 0.0
      %1880 = vmatpush1.msra.mxu0 %v1842
      %1881 = vmatprep.subr.mxu0 0.0
      %1882 = vmatpush1.msra.mxu0 %v1843
      %1883 = vmatprep.subr.mxu0 0.0
      %1884 = vmatpush1.msra.mxu0 0.0
      %1885 = vmatprep.subr.mxu0 0.0
      %1886 = vmatpush1.msra.mxu0 0.0
      %1887 = vmatprep.subr.mxu0 0.0
      %1888 = vmatpush1.msra.mxu0 0.0
      %1889 = vmatprep.subr.mxu0 0.0
      %1890 = vmatpush1.msra.mxu0 0.0
      %1891 = vmatprep.subr.mxu0 0.0
      %1892 = vmatpush1.msra.mxu0 0.0
      %1893 = vmatprep.subr.mxu0 0.0
      %1894 = vmatpush1.msra.mxu0 0.0
      %1895 = vmatprep.subr.mxu0 0.0
      %1896 = vmatpush1.msra.mxu0 0.0
      %1897 = vmatprep.subr.mxu0 0.0
      %1898 = vmatpush1.msra.mxu0 0.0
      %1899 = vmatprep.subr.mxu0 0.0
      %1900 = vmatpush1.msra.mxu0 0.0
      %1901 = vmatprep.subr.mxu0 0.0
      %1902 = vmatpush1.msra.mxu0 0.0
      %1903 = vmatprep.subr.mxu0 0.0
      %1904 = vmatpush1.msra.mxu0 0.0
      %1905 = vmatprep.subr.mxu0 0.0
      %1906 = vmatpush1.msra.mxu0 0.0
      %1907 = vmatprep.subr.mxu0 0.0
      %1908 = vmatpush1.msra.mxu0 0.0
      %1909 = vmatprep.subr.mxu0 0.0
      %1910 = vmatpush1.msra.mxu0 0.0
      %1911 = vmatprep.subr.mxu0 0.0
      %1912 = vmatpush1.msra.mxu0 0.0
      %1913 = vmatprep.subr.mxu0 0.0
      %1914 = vmatpush1.msra.mxu0 0.0
      %1915 = vmatprep.mubr.f32.mxu0 0.0
      %1916 = vmatmul.mubr.f32.gmra.mrb[0].mxu0 %v1822
      %v1917 = vpop.f32.mrb[0].mxu0
      %v1918 = vadd.f32 %v1849, %v1917
      %v1919 = vpop.f32.mrb[0].mxu0
      %1920 = vdwg.mxu0
      %1921 = vst [vmem:[#allocation13] sm:$0xff] %v1918
    $region49: #{tpu_custom_call.1} parent=1 // pred_fallthru
      _
    // Predicated region
    $region50: #{tpu_custom_call.1} parent=1 // pred_check
      _
    $region51: #{tpu_custom_call.1} parent=1 // pred_check_branch
      %1923 = sbr.rel (0) target = $region53
    $region52: #{tpu_custom_call.1} parent=1 // pred_region
      %s1925 = ssub.s32 128, 128
      %1926 = vsyncadd [#allocation7], %s1925
      %s1928 = sshll.u32 [#allocation13], 4
      %s1929 = int_to_ptr.vmem [resolvable:$true] %s1928
      %1931 = dma.vmem_to_hbm [thread:$0]  %s1929, 128, %s6, [#allocation7]
    $region53: #{tpu_custom_call.1} parent=1 // pred_fallthru
      _
    // Predicated region
    $region54: #{tpu_custom_call.1} parent=1 // pred_check
      _
    $region55: #{tpu_custom_call.1} parent=1 // pred_check_branch
      %1933 = sbr.rel (0) target = $region57
    $region56: #{tpu_custom_call.1} parent=1 // pred_region
      %1934 = dma.done [#allocation7], 128
    $region57: #{tpu_custom_call.1} parent=1 // pred_fallthru
      _
    %1935 = vsyncpa [#allocation6], 1
    %1936 = vsyncpa [#allocation9], 1
    %1937 = vsyncpa [#allocation12], 1
    %1938 = vsyncpa [#allocation7], 1

</llo_original>
